<compile_context>
chip_gen: v7x
topology: tpu7x:2x2x1
jax: 0.10.0
libtpu: 0.0.40
codegen_flags: <defaults>
</compile_context>

<pallas_src>
import jax
import jax.numpy as jnp
from jax import lax
from jax.experimental import pallas as pl
from jax.experimental.pallas import tpu as pltpu

N_STEPS = 500
BETA_START = 1e-4
BETA_END = 0.02

# f32 keeps the kernel numerically identical to the f32 PyTorch spec; flip to
# jnp.bfloat16 for ~2-3x MXU throughput on v6e/v7x at scaled sizes (activations
# and accumulation stay f32; only dot() operands are cast).
MATMUL_DTYPE = jnp.float32


def diffusion_loss_kernel(s1_ref, s2_ref, x_ref, noise_ref, w1_ref, bt_ref,
                          w2_ref, b2_ref, out_ref):
    """One grid step == Bblk batch samples, lane-dense (rows, W*channels)."""
    Bblk, H, WC = x_ref.shape
    WHd = bt_ref.shape[2]

    # ---- q_sample: x_noisy = s1*x + s2*noise (per-sample scalars arrive
    #      pre-broadcast as (Bblk, 1, WC) and broadcast over the H sublanes).
    noise = noise_ref[...]                                       # (Bblk,H,WC) f32
    xn = s1_ref[...] * x_ref[...] + s2_ref[...] * noise          # f32

    # ---- conv1 (3x3, C -> Hd): ONE matmul with the dy-stacked band.
    #      LHS lanes = [row-above | row | row-below], zero rows give SAME
    #      padding in height; shifts are per sample so samples don't bleed.
    zx = jnp.zeros((Bblk, 1, WC), xn.dtype)
    lhs1 = jnp.concatenate([
        jnp.concatenate([zx, xn[:, :H - 1]], axis=1),            # dy = 0 tap
        xn,                                                      # dy = 1 tap
        jnp.concatenate([xn[:, 1:], zx], axis=1),                # dy = 2 tap
    ], axis=2).reshape(Bblk * H, 3 * WC)                         # free: H % 8 == 0
    h = jnp.dot(lhs1.astype(MATMUL_DTYPE), w1_ref[...],
                preferred_element_type=jnp.float32)              # (Bblk*H, WHd)

    # bias + time embedding (pre-tiled per sample to (Bblk,1,W*Hd)) + ReLU, f32.
    h = jnp.maximum(h.reshape(Bblk, H, WHd) + bt_ref[...], 0.0)

    # ---- conv2 (3x3, Hd -> C): same fused-tap single matmul, K = 3*W*Hd.
    zh = jnp.zeros((Bblk, 1, WHd), h.dtype)
    lhs2 = jnp.concatenate([
        jnp.concatenate([zh, h[:, :H - 1]], axis=1),
        h,
        jnp.concatenate([h[:, 1:], zh], axis=1),
    ], axis=2).reshape(Bblk * H, 3 * WHd)
    pred = jnp.dot(lhs2.astype(MATMUL_DTYPE), w2_ref[...],
                   preferred_element_type=jnp.float32)           # (Bblk*H, WC)
    pred = pred + b2_ref[...]                                    # (1, WC) broadcast

    # ---- per-block partial sum of squared error (wrapper applies 1/(B*H*W*C)).
    #      Kept per-step (tiny masked store) so the batch axis stays "parallel".
    diff = pred - noise.reshape(Bblk * H, WC)
    out_ref[...] = jnp.sum(diff * diff).reshape(1, 1, 1)


def make_schedule(n_steps=N_STEPS, beta_start=BETA_START, beta_end=BETA_END):
    betas = jnp.linspace(beta_start, beta_end, n_steps, dtype=jnp.float32)
    alphas = 1.0 - betas
    alphas_cumprod = jnp.cumprod(alphas)
    return {
        "betas": betas,
        "alphas": alphas,
        "alphas_cumprod": alphas_cumprod,
        "sqrt_alphas_cumprod": jnp.sqrt(alphas_cumprod),
        "sqrt_one_minus_alphas_cumprod": jnp.sqrt(1.0 - alphas_cumprod),
    }


def init_params(key, channels, hidden):
    k1, k2, k3, k4, k5 = jax.random.split(key, 5)
    return {
        "w1": 0.1 * jax.random.normal(k1, (3, 3, channels, hidden), jnp.float32),
        "b1": 0.01 * jax.random.normal(k2, (1, hidden), jnp.float32),
        "temb_table": 0.1 * jax.random.normal(k3, (N_STEPS, hidden), jnp.float32),
        "w2": 0.1 * jax.random.normal(k4, (3, 3, hidden, channels), jnp.float32),
        "b2": 0.01 * jax.random.normal(k5, (1, channels), jnp.float32),
    }


def make_band(w, width):
    """(3,3,Cin,Cout) conv kernel -> (3*width*Cin, width*Cout) fused band.

    band[dy*width*Cin + xi*Cin + ci, xo*Cout + co] = w[dy, xi-xo+1, ci, co];
    out-of-range column taps are simply absent (SAME zero-padding in width),
    and the dy bands are stacked along K so one matmul covers all row taps.
    """
    kh, kw, _, _ = w.shape
    return jnp.concatenate([
        sum(jnp.kron(jnp.eye(width, k=1 - dx, dtype=w.dtype), w[dy, dx])
            for dx in range(kw))
        for dy in range(kh)], axis=0)


def choose_block_b(B, H):
    """Samples stacked per grid step: fill the MXU M (<=256 rows) but keep the
    grid length >= 2 so ("parallel",) still uses both TensorCores on v7x."""
    bb = max(1, min(B // 2, max(1, 256 // H)))
    while B % bb:
        bb -= 1
    return max(bb, 1)


def diffusion_forward(params, sched, x_start_nchw, key, block_b=None):
    """Returns (loss, intermediates-for-reference-check)."""
    x_nhwc = jnp.transpose(x_start_nchw, (0, 2, 3, 1)).astype(jnp.float32)
    B, H, W, C = x_nhwc.shape
    Hd = params["w1"].shape[3]
    WC, WHd = W * C, W * Hd

    kt, kn = jax.random.split(key)
    t = jax.random.randint(kt, (B,), 0, N_STEPS)              # torch.randint
    noise = jax.random.normal(kn, x_nhwc.shape, jnp.float32)  # torch.randn_like

    s1 = sched["sqrt_alphas_cumprod"][t]                      # (B,)
    s2 = sched["sqrt_one_minus_alphas_cumprod"][t]            # (B,)
    temb = params["temb_table"][t]                            # (B, Hd)

    if block_b is None:
        block_b = choose_block_b(B, H)
    assert B % block_b == 0, (B, block_b)
    grid_len = B // block_b

    # ---- wrapper-side layout plumbing (pure reshapes / tiny constants)
    x2 = x_nhwc.reshape(B, H, WC)                             # lane-dense slabs
    n2 = noise.reshape(B, H, WC)
    s1b = jnp.broadcast_to(s1[:, None, None], (B, 1, WC)).astype(jnp.float32)
    s2b = jnp.broadcast_to(s2[:, None, None], (B, 1, WC)).astype(jnp.float32)
    w1f = make_band(params["w1"], W).astype(MATMUL_DTYPE)     # (3*W*C,  W*Hd)
    w2f = make_band(params["w2"], W).astype(MATMUL_DTYPE)     # (3*W*Hd, W*C )
    bt = (jnp.tile(params["b1"].reshape(1, Hd), (B, W)) +
          jnp.tile(temb, (1, W))).reshape(B, 1, WHd)          # bias1 + temb
    b2t = jnp.tile(params["b2"].reshape(1, C), (1, W))        # (1, W*C)

    partial = pl.pallas_call(
        diffusion_loss_kernel,
        out_shape=jax.ShapeDtypeStruct((grid_len, 1, 1), jnp.float32),
        grid=(grid_len,),
        in_specs=[
            pl.BlockSpec((block_b, 1, WC), lambda b: (b, 0, 0)),       # s1
            pl.BlockSpec((block_b, 1, WC), lambda b: (b, 0, 0)),       # s2
            pl.BlockSpec((block_b, H, WC), lambda b: (b, 0, 0)),       # x
            pl.BlockSpec((block_b, H, WC), lambda b: (b, 0, 0)),       # noise
            pl.BlockSpec((3 * WC, WHd), lambda b: (0, 0)),             # conv1 band
            pl.BlockSpec((block_b, 1, WHd), lambda b: (b, 0, 0)),      # bias1+temb
            pl.BlockSpec((3 * WHd, WC), lambda b: (0, 0)),             # conv2 band
            pl.BlockSpec((1, WC), lambda b: (0, 0)),                   # bias2
        ],
        out_specs=pl.BlockSpec((1, 1, 1), lambda b: (b, 0, 0)),
        compiler_params=pltpu.CompilerParams(
            dimension_semantics=("parallel",)),
    )(s1b, s2b, x2, n2, w1f, bt, w2f, b2t)

    loss = jnp.sum(partial) / (B * H * W * C)                 # global-mean MSE
    return loss, (x_nhwc, noise, s1, s2, temb)


def reference_loss(params, x, noise, s1, s2, temb):
    """Pure-JAX reference of the same forward, for correctness checking."""
    x_noisy = s1.reshape(-1, 1, 1, 1) * x + s2.reshape(-1, 1, 1, 1) * noise
    dn = ("NHWC", "HWIO", "NHWC")
    h = lax.conv_general_dilated(x_noisy, params["w1"], (1, 1), "SAME",
                                 dimension_numbers=dn)
    h = h + params["b1"].reshape(1, 1, 1, -1) + temb[:, None, None, :]
    h = jnp.maximum(h, 0.0)
    pred = lax.conv_general_dilated(h, params["w2"], (1, 1), "SAME",
                                    dimension_numbers=dn)
    pred = pred + params["b2"].reshape(1, 1, 1, -1)
    return jnp.mean((pred - noise) ** 2)


if __name__ == "__main__":
    key = jax.random.PRNGKey(0)
    k_param, k_data, k_fwd = jax.random.split(key, 3)

    B, C, H, W = 2, 4, 16, 16
    HIDDEN = 32

    params = init_params(k_param, C, HIDDEN)
    sched = make_schedule()
    x_start = jax.random.normal(k_data, (B, C, H, W), jnp.float32)  # NCHW input

    loss, (x_nhwc, noise, s1, s2, temb) = diffusion_forward(params, sched,
                                                            x_start, k_fwd)
    loss = jax.block_until_ready(loss)
    ref = jax.block_until_ready(reference_loss(params, x_nhwc, noise, s1, s2, temb))
    assert jnp.allclose(loss, ref, rtol=1e-4, atol=1e-5), (loss, ref)

    # Secondary check: exercise the batch-stacked path (Bblk > 1, grid still 2).
    k_data2, k_fwd2 = jax.random.split(jax.random.PRNGKey(1))
    x_start8 = jax.random.normal(k_data2, (8, C, H, W), jnp.float32)
    loss8, aux8 = diffusion_forward(params, sched, x_start8, k_fwd2)
    loss8 = jax.block_until_ready(loss8)
    ref8 = jax.block_until_ready(reference_loss(params, *aux8))
    assert jnp.allclose(loss8, ref8, rtol=1e-4, atol=1e-5), (loss8, ref8)

    print("KERNEL_OK")
</pallas_src>

<mosaic_0001>
module attributes {stable_mosaic.version = 11 : i64} {
  func.func @diffusion_loss_kernel(%arg0: i32, %arg1: memref<1x1x64xf32, #tpu.memory_space<vmem>>, %arg2: memref<1x1x64xf32, #tpu.memory_space<vmem>>, %arg3: memref<1x16x64xf32, #tpu.memory_space<vmem>>, %arg4: memref<1x16x64xf32, #tpu.memory_space<vmem>>, %arg5: memref<192x512xf32, #tpu.memory_space<vmem>>, %arg6: memref<1x1x512xf32, #tpu.memory_space<vmem>>, %arg7: memref<1536x64xf32, #tpu.memory_space<vmem>>, %arg8: memref<1x64xf32, #tpu.memory_space<vmem>>, %arg9: memref<1x1x1xf32, #tpu.memory_space<vmem>>) attributes {dimension_semantics = [#tpu.dimension_semantics<parallel>], iteration_bounds = array<i64: 2>, scalar_prefetch = 0 : i64, scratch_operands = 0 : i64, tpu.core_type = #tpu.core_type<tc>, window_params = [{transform_indices = @transform_0, window_bounds = array<i64: 1, 1, 64>}, {transform_indices = @transform_1, window_bounds = array<i64: 1, 1, 64>}, {transform_indices = @transform_2, window_bounds = array<i64: 1, 16, 64>}, {transform_indices = @transform_3, window_bounds = array<i64: 1, 16, 64>}, {pipeline_mode = #tpu.pipeline_mode<synchronous>, transform_indices = @transform_4, window_bounds = array<i64: 192, 512>}, {transform_indices = @transform_5, window_bounds = array<i64: 1, 1, 512>}, {pipeline_mode = #tpu.pipeline_mode<synchronous>, transform_indices = @transform_6, window_bounds = array<i64: 1536, 64>}, {pipeline_mode = #tpu.pipeline_mode<synchronous>, transform_indices = @transform_7, window_bounds = array<i64: 1, 64>}, {transform_indices = @transform_8, window_bounds = array<i64: 1, 1, 1>}]} {
    %c0 = arith.constant 0 : index
    %c0_0 = arith.constant 0 : index
    %c0_1 = arith.constant 0 : index
    %0 = vector.load %arg4[%c0, %c0_0, %c0_1] : memref<1x16x64xf32, #tpu.memory_space<vmem>>, vector<1x16x64xf32>
    %c0_2 = arith.constant 0 : index
    %c0_3 = arith.constant 0 : index
    %c0_4 = arith.constant 0 : index
    %1 = vector.load %arg1[%c0_2, %c0_3, %c0_4] : memref<1x1x64xf32, #tpu.memory_space<vmem>>, vector<1x1x64xf32>
    %c0_5 = arith.constant 0 : index
    %c0_6 = arith.constant 0 : index
    %c0_7 = arith.constant 0 : index
    %2 = vector.load %arg3[%c0_5, %c0_6, %c0_7] : memref<1x16x64xf32, #tpu.memory_space<vmem>>, vector<1x16x64xf32>
    %3 = vector.broadcast %1 : vector<1x1x64xf32> to vector<1x16x64xf32>
    %4 = arith.mulf %3, %2 : vector<1x16x64xf32>
    %c0_8 = arith.constant 0 : index
    %c0_9 = arith.constant 0 : index
    %c0_10 = arith.constant 0 : index
    %5 = vector.load %arg2[%c0_8, %c0_9, %c0_10] : memref<1x1x64xf32, #tpu.memory_space<vmem>>, vector<1x1x64xf32>
    %6 = vector.broadcast %5 : vector<1x1x64xf32> to vector<1x16x64xf32>
    %7 = arith.mulf %6, %0 : vector<1x16x64xf32>
    %8 = arith.addf %4, %7 : vector<1x16x64xf32>
    %cst = arith.constant 0.000000e+00 : f32
    %9 = vector.broadcast %cst : f32 to vector<1x1x64xf32>
    %10 = vector.extract_strided_slice %8 {offsets = [0, 0, 0], sizes = [1, 15, 64], strides = [1, 1, 1]} : vector<1x16x64xf32> to vector<1x15x64xf32>
    %11 = tpu.concatenate %9, %10 in 1 : vector<1x1x64xf32>, vector<1x15x64xf32> -> vector<1x16x64xf32>
    %12 = vector.extract_strided_slice %8 {offsets = [0, 1, 0], sizes = [1, 15, 64], strides = [1, 1, 1]} : vector<1x16x64xf32> to vector<1x15x64xf32>
    %13 = tpu.concatenate %12, %9 in 1 : vector<1x15x64xf32>, vector<1x1x64xf32> -> vector<1x16x64xf32>
    %14 = tpu.concatenate %11, %8, %13 in 2 : vector<1x16x64xf32>, vector<1x16x64xf32>, vector<1x16x64xf32> -> vector<1x16x192xf32>
    %15 = vector.shape_cast %14 : vector<1x16x192xf32> to vector<16x192xf32>
    %c0_11 = arith.constant 0 : index
    %c0_12 = arith.constant 0 : index
    %16 = vector.load %arg5[%c0_11, %c0_12] : memref<192x512xf32, #tpu.memory_space<vmem>>, vector<192x512xf32>
    %cst_13 = arith.constant dense<0.000000e+00> : vector<16x512xf32>
    %17 = tpu.matmul %15, %16, %cst_13 {dimension_numbers = #tpu.dot_dimension_numbers<[1], [0], [0], [1], [0, 0, 1, 1], [], []>} : vector<16x192xf32>, vector<192x512xf32>, vector<16x512xf32> -> vector<16x512xf32>
    %18 = vector.shape_cast %17 : vector<16x512xf32> to vector<1x16x512xf32>
    %c0_14 = arith.constant 0 : index
    %c0_15 = arith.constant 0 : index
    %c0_16 = arith.constant 0 : index
    %19 = vector.load %arg6[%c0_14, %c0_15, %c0_16] : memref<1x1x512xf32, #tpu.memory_space<vmem>>, vector<1x1x512xf32>
    %20 = vector.broadcast %19 : vector<1x1x512xf32> to vector<1x16x512xf32>
    %21 = arith.addf %18, %20 : vector<1x16x512xf32>
    %cst_17 = arith.constant 0.000000e+00 : f32
    %22 = vector.broadcast %cst_17 : f32 to vector<1x16x512xf32>
    %23 = arith.maximumf %21, %22 : vector<1x16x512xf32>
    %cst_18 = arith.constant 0.000000e+00 : f32
    %24 = vector.broadcast %cst_18 : f32 to vector<1x1x512xf32>
    %25 = vector.extract_strided_slice %23 {offsets = [0, 0, 0], sizes = [1, 15, 512], strides = [1, 1, 1]} : vector<1x16x512xf32> to vector<1x15x512xf32>
    %26 = tpu.concatenate %24, %25 in 1 : vector<1x1x512xf32>, vector<1x15x512xf32> -> vector<1x16x512xf32>
    %27 = vector.extract_strided_slice %23 {offsets = [0, 1, 0], sizes = [1, 15, 512], strides = [1, 1, 1]} : vector<1x16x512xf32> to vector<1x15x512xf32>
    %28 = tpu.concatenate %27, %24 in 1 : vector<1x15x512xf32>, vector<1x1x512xf32> -> vector<1x16x512xf32>
    %29 = tpu.concatenate %26, %23, %28 in 2 : vector<1x16x512xf32>, vector<1x16x512xf32>, vector<1x16x512xf32> -> vector<1x16x1536xf32>
    %30 = vector.shape_cast %29 : vector<1x16x1536xf32> to vector<16x1536xf32>
    %c0_19 = arith.constant 0 : index
    %c0_20 = arith.constant 0 : index
    %31 = vector.load %arg7[%c0_19, %c0_20] : memref<1536x64xf32, #tpu.memory_space<vmem>>, vector<1536x64xf32>
    %cst_21 = arith.constant dense<0.000000e+00> : vector<16x64xf32>
    %32 = tpu.matmul %30, %31, %cst_21 {dimension_numbers = #tpu.dot_dimension_numbers<[1], [0], [0], [1], [0, 0, 1, 1], [], []>} : vector<16x1536xf32>, vector<1536x64xf32>, vector<16x64xf32> -> vector<16x64xf32>
    %c0_22 = arith.constant 0 : index
    %c0_23 = arith.constant 0 : index
    %33 = vector.load %arg8[%c0_22, %c0_23] : memref<1x64xf32, #tpu.memory_space<vmem>>, vector<1x64xf32>
    %34 = vector.broadcast %33 : vector<1x64xf32> to vector<16x64xf32>
    %35 = arith.addf %32, %34 : vector<16x64xf32>
    %36 = vector.shape_cast %0 : vector<1x16x64xf32> to vector<16x64xf32>
    %37 = arith.subf %35, %36 : vector<16x64xf32>
    %38 = arith.mulf %37, %37 : vector<16x64xf32>
    %39 = vector.shape_cast %38 : vector<16x64xf32> to vector<1x16x64xf32>
    %cst_24 = arith.constant dense<0.000000e+00> : vector<1xf32>
    %40 = vector.multi_reduction <add>, %39, %cst_24 [1, 2] : vector<1x16x64xf32> to vector<1xf32>
    %41 = vector.shape_cast %40 : vector<1xf32> to vector<1x1x1xf32>
    %42 = vector.extract %41[0, 0, 0] : f32 from vector<1x1x1xf32>
    %43 = vector.broadcast %42 : f32 to vector<1x1x1xf32>
    %c0_25 = arith.constant 0 : index
    %c0_26 = arith.constant 0 : index
    %c0_27 = arith.constant 0 : index
    %44 = vector.load %arg9[%c0_25, %c0_26, %c0_27] : memref<1x1x1xf32, #tpu.memory_space<vmem>>, vector<1x1x1xf32>
    tpu.vector_store %arg9[%c0_25, %c0_26, %c0_27], %43 {strides = array<i32>} : memref<1x1x1xf32, #tpu.memory_space<vmem>>, vector<1x1x1xf32>,
    return
  }
  func.func @transform_0(%arg0: i32) -> (i32, i32, i32) {
    %c0_i32 = arith.constant 0 : i32
    %c0_i32_0 = arith.constant 0 : i32
    %c0_i32_1 = arith.constant 0 : i32
    return %arg0, %c0_i32, %c0_i32_0 : i32, i32, i32
  }
  func.func @transform_1(%arg0: i32) -> (i32, i32, i32) {
    %c0_i32 = arith.constant 0 : i32
    %c0_i32_0 = arith.constant 0 : i32
    %c0_i32_1 = arith.constant 0 : i32
    return %arg0, %c0_i32, %c0_i32_0 : i32, i32, i32
  }
  func.func @transform_2(%arg0: i32) -> (i32, i32, i32) {
    %c0_i32 = arith.constant 0 : i32
    %c0_i32_0 = arith.constant 0 : i32
    %c0_i32_1 = arith.constant 0 : i32
    return %arg0, %c0_i32, %c0_i32_0 : i32, i32, i32
  }
  func.func @transform_3(%arg0: i32) -> (i32, i32, i32) {
    %c0_i32 = arith.constant 0 : i32
    %c0_i32_0 = arith.constant 0 : i32
    %c0_i32_1 = arith.constant 0 : i32
    return %arg0, %c0_i32, %c0_i32_0 : i32, i32, i32
  }
  func.func @transform_4(%arg0: i32) -> (i32, i32) {
    %c0_i32 = arith.constant 0 : i32
    %c0_i32_0 = arith.constant 0 : i32
    %c0_i32_1 = arith.constant 0 : i32
    return %c0_i32, %c0_i32_0 : i32, i32
  }
  func.func @transform_5(%arg0: i32) -> (i32, i32, i32) {
    %c0_i32 = arith.constant 0 : i32
    %c0_i32_0 = arith.constant 0 : i32
    %c0_i32_1 = arith.constant 0 : i32
    return %arg0, %c0_i32, %c0_i32_0 : i32, i32, i32
  }
  func.func @transform_6(%arg0: i32) -> (i32, i32) {
    %c0_i32 = arith.constant 0 : i32
    %c0_i32_0 = arith.constant 0 : i32
    %c0_i32_1 = arith.constant 0 : i32
    return %c0_i32, %c0_i32_0 : i32, i32
  }
  func.func @transform_7(%arg0: i32) -> (i32, i32) {
    %c0_i32 = arith.constant 0 : i32
    %c0_i32_0 = arith.constant 0 : i32
    %c0_i32_1 = arith.constant 0 : i32
    return %c0_i32, %c0_i32_0 : i32, i32
  }
  func.func @transform_8(%arg0: i32) -> (i32, i32, i32) {
    %c0_i32 = arith.constant 0 : i32
    %c0_i32_0 = arith.constant 0 : i32
    %c0_i32_1 = arith.constant 0 : i32
    return %arg0, %c0_i32, %c0_i32_0 : i32, i32, i32
  }
}

</mosaic_0001>

<llo_original>
// kernel: tpu_custom_call.1
$region0: #{tpu_custom_call.1}
  #allocation0 [shape = 'u32[]', space=smem, size = 0x4, offset = 0x4, fixed_abs, tag = 'smem constant byte address 0x4 - core index']
  #allocation1 [shape = 'u32[144,128]{1,0:T(1,128)}', space=vmem, size = 0x12000, scoped, tag = 'internal scratch']
  %s0 = inlined_call_operand.vmem [shape: f32[2,1,64], index: 0, kind: input, shape index: {}]
  %s1 = inlined_call_operand.vmem [shape: f32[2,1,64], index: 1, kind: input, shape index: {}]
  %s2 = inlined_call_operand.vmem [shape: f32[2,16,64], index: 2, kind: input, shape index: {}]
  %s3 = inlined_call_operand.vmem [shape: f32[2,16,64], index: 3, kind: input, shape index: {}]
  %s4 = inlined_call_operand.vmem [shape: f32[192,512], index: 4, kind: input, shape index: {}]
  %s5 = inlined_call_operand.vmem [shape: f32[2,1,512], index: 5, kind: input, shape index: {}]
  %s6 = inlined_call_operand.vmem [shape: f32[1536,64], index: 6, kind: input, shape index: {}]
  %s7 = inlined_call_operand.vmem [shape: f32[1,64], index: 7, kind: input, shape index: {}]
  %s8 = inlined_call_operand.vmem [shape: f32[2,1,1], index: 8, kind: output, shape index: {}]
  %s9 = sld [smem:[#allocation0]]
  $region65: #{tpu_custom_call.1} parent=0
    _
  %s11 = ssub.s32 1, %s9
  %s12 = scalar_select 0, %s11, %s9
  loop: start=0, step=1, limit=4
  $region2: #{tpu_custom_call.1} parent=0 // loop_pre_header
    _
  $region3: #{tpu_custom_call.1} parent=0 // loop_header
    %s14 = sphi 0, %s18
    %p15 = scmp.ge.s32.totalorder %s14, 4
    %s24 = sphi 0, %s26
    %s27 = sphi 0, %s24
    %s28 = sphi 0, %s27
    %s44 = sphi 0, %s28
    %s50 = sphi 0, %s52
    %s53 = sphi 0, %s50
    %s54 = sphi 0, %s53
    %s70 = sphi 0, %s54
    %s76 = sphi 0, %s78
    %s79 = sphi 0, %s76
    %s80 = sphi 0, %s79
    %s96 = sphi 0, %s80
    %s102 = sphi 0, %s104
    %s105 = sphi 0, %s102
    %s106 = sphi 0, %s105
    %s122 = sphi 0, %s106
    %s126 = sphi 0, %s126
    %s128 = sphi 0, %s126
    %s129 = sphi 0, %s128
    %s143 = sphi 0, %s129
    %s149 = sphi 0, %s151
    %s152 = sphi 0, %s149
    %s153 = sphi 0, %s152
    %s169 = sphi 0, %s153
    %s173 = sphi 0, %s173
    %s175 = sphi 0, %s173
    %s176 = sphi 0, %s175
    %s190 = sphi 0, %s176
    %s194 = sphi 0, %s194
    %s196 = sphi 0, %s194
    %s197 = sphi 0, %s196
    %s211 = sphi 0, %s197
    %s217 = sphi 0, %s219
    %s220 = sphi 0, %s217
    %s221 = sphi 0, %s220
    %s237 = sphi 0, %s221
  $region4: #{tpu_custom_call.1} parent=0 // loop_header_branch
    %17 = sbr.rel (%p15) target = $region8
  $region5: #{tpu_custom_call.1} parent=0 // loop_body
    %s19 = ssub.s32 %s14, 1
    %s20 = ssub.s32 %s14, 2
    %s21 = sadd.s32 %s14, 1
    %s22 = ssub.s32 %s14, %s21
    %p23 = scmp.eq.s32.totalorder %s22, 0
    %s25 = sadd.s32 %s24, 1
    %s26 = scalar_select %p23, %s24, %s25
    %p29 = pneg %p23
    %p30 = scmp.eq.s32.totalorder %s14, 1
    %p31 = por %p29, %p30
    %p32 = scmp.ne.s32.totalorder %s24, %s27
    %p33 = scmp.eq.s32.totalorder %s14, 0
    %p34 = por %p32, %p33
    %p35 = scmp.ne.s32.totalorder %s24, %s27
    %p36 = scmp.eq.s32.totalorder %s19, 1
    %p37 = por %p35, %p36
    %p38 = scmp.ne.s32.totalorder %s27, %s28
    %p39 = scmp.eq.s32.totalorder %s19, 0
    %p40 = por %p38, %p39
    %p41 = scmp.ne.s32.totalorder %s27, %s28
    %p42 = scmp.eq.s32.totalorder %s20, 1
    %p43 = por %p41, %p42
    %p45 = scmp.ne.s32.totalorder %s28, %s44
    %p46 = scmp.eq.s32.totalorder %s20, 0
    %p47 = por %p45, %p46
    %s48 = ssub.s32 %s14, %s21
    %p49 = scmp.eq.s32.totalorder %s48, 0
    %s51 = sadd.s32 %s50, 1
    %s52 = scalar_select %p49, %s50, %s51
    %p55 = pneg %p49
    %p56 = scmp.eq.s32.totalorder %s14, 1
    %p57 = por %p55, %p56
    %p58 = scmp.ne.s32.totalorder %s50, %s53
    %p59 = scmp.eq.s32.totalorder %s14, 0
    %p60 = por %p58, %p59
    %p61 = scmp.ne.s32.totalorder %s50, %s53
    %p62 = scmp.eq.s32.totalorder %s19, 1
    %p63 = por %p61, %p62
    %p64 = scmp.ne.s32.totalorder %s53, %s54
    %p65 = scmp.eq.s32.totalorder %s19, 0
    %p66 = por %p64, %p65
    %p67 = scmp.ne.s32.totalorder %s53, %s54
    %p68 = scmp.eq.s32.totalorder %s20, 1
    %p69 = por %p67, %p68
    %p71 = scmp.ne.s32.totalorder %s54, %s70
    %p72 = scmp.eq.s32.totalorder %s20, 0
    %p73 = por %p71, %p72
    %s74 = ssub.s32 %s14, %s21
    %p75 = scmp.eq.s32.totalorder %s74, 0
    %s77 = sadd.s32 %s76, 1
    %s78 = scalar_select %p75, %s76, %s77
    %p81 = pneg %p75
    %p82 = scmp.eq.s32.totalorder %s14, 1
    %p83 = por %p81, %p82
    %p84 = scmp.ne.s32.totalorder %s76, %s79
    %p85 = scmp.eq.s32.totalorder %s14, 0
    %p86 = por %p84, %p85
    %p87 = scmp.ne.s32.totalorder %s76, %s79
    %p88 = scmp.eq.s32.totalorder %s19, 1
    %p89 = por %p87, %p88
    %p90 = scmp.ne.s32.totalorder %s79, %s80
    %p91 = scmp.eq.s32.totalorder %s19, 0
    %p92 = por %p90, %p91
    %p93 = scmp.ne.s32.totalorder %s79, %s80
    %p94 = scmp.eq.s32.totalorder %s20, 1
    %p95 = por %p93, %p94
    %p97 = scmp.ne.s32.totalorder %s80, %s96
    %p98 = scmp.eq.s32.totalorder %s20, 0
    %p99 = por %p97, %p98
    %s100 = ssub.s32 %s14, %s21
    %p101 = scmp.eq.s32.totalorder %s100, 0
    %s103 = sadd.s32 %s102, 1
    %s104 = scalar_select %p101, %s102, %s103
    %p107 = pneg %p101
    %p108 = scmp.eq.s32.totalorder %s14, 1
    %p109 = por %p107, %p108
    %p110 = scmp.ne.s32.totalorder %s102, %s105
    %p111 = scmp.eq.s32.totalorder %s14, 0
    %p112 = por %p110, %p111
    %p113 = scmp.ne.s32.totalorder %s102, %s105
    %p114 = scmp.eq.s32.totalorder %s19, 1
    %p115 = por %p113, %p114
    %p116 = scmp.ne.s32.totalorder %s105, %s106
    %p117 = scmp.eq.s32.totalorder %s19, 0
    %p118 = por %p116, %p117
    %p119 = scmp.ne.s32.totalorder %s105, %s106
    %p120 = scmp.eq.s32.totalorder %s20, 1
    %p121 = por %p119, %p120
    %p123 = scmp.ne.s32.totalorder %s106, %s122
    %p124 = scmp.eq.s32.totalorder %s20, 0
    %p125 = por %p123, %p124
    %s127 = sadd.s32 %s126, 1
    %p130 = scmp.eq.s32.totalorder %s14, 1
    %p131 = scmp.ne.s32.totalorder %s126, %s128
    %p132 = scmp.eq.s32.totalorder %s14, 0
    %p133 = por %p131, %p132
    %p134 = scmp.ne.s32.totalorder %s126, %s128
    %p135 = scmp.eq.s32.totalorder %s19, 1
    %p136 = por %p134, %p135
    %p137 = scmp.ne.s32.totalorder %s128, %s129
    %p138 = scmp.eq.s32.totalorder %s19, 0
    %p139 = por %p137, %p138
    %p140 = scmp.ne.s32.totalorder %s128, %s129
    %p141 = scmp.eq.s32.totalorder %s20, 1
    %p142 = por %p140, %p141
    %p144 = scmp.ne.s32.totalorder %s129, %s143
    %p145 = scmp.eq.s32.totalorder %s20, 0
    %p146 = por %p144, %p145
    %s147 = ssub.s32 %s14, %s21
    %p148 = scmp.eq.s32.totalorder %s147, 0
    %s150 = sadd.s32 %s149, 1
    %s151 = scalar_select %p148, %s149, %s150
    %p154 = pneg %p148
    %p155 = scmp.eq.s32.totalorder %s14, 1
    %p156 = por %p154, %p155
    %p157 = scmp.ne.s32.totalorder %s149, %s152
    %p158 = scmp.eq.s32.totalorder %s14, 0
    %p159 = por %p157, %p158
    %p160 = scmp.ne.s32.totalorder %s149, %s152
    %p161 = scmp.eq.s32.totalorder %s19, 1
    %p162 = por %p160, %p161
    %p163 = scmp.ne.s32.totalorder %s152, %s153
    %p164 = scmp.eq.s32.totalorder %s19, 0
    %p165 = por %p163, %p164
    %p166 = scmp.ne.s32.totalorder %s152, %s153
    %p167 = scmp.eq.s32.totalorder %s20, 1
    %p168 = por %p166, %p167
    %p170 = scmp.ne.s32.totalorder %s153, %s169
    %p171 = scmp.eq.s32.totalorder %s20, 0
    %p172 = por %p170, %p171
    %s174 = sadd.s32 %s173, 1
    %p177 = scmp.eq.s32.totalorder %s14, 1
    %p178 = scmp.ne.s32.totalorder %s173, %s175
    %p179 = scmp.eq.s32.totalorder %s14, 0
    %p180 = por %p178, %p179
    %p181 = scmp.ne.s32.totalorder %s173, %s175
    %p182 = scmp.eq.s32.totalorder %s19, 1
    %p183 = por %p181, %p182
    %p184 = scmp.ne.s32.totalorder %s175, %s176
    %p185 = scmp.eq.s32.totalorder %s19, 0
    %p186 = por %p184, %p185
    %p187 = scmp.ne.s32.totalorder %s175, %s176
    %p188 = scmp.eq.s32.totalorder %s20, 1
    %p189 = por %p187, %p188
    %p191 = scmp.ne.s32.totalorder %s176, %s190
    %p192 = scmp.eq.s32.totalorder %s20, 0
    %p193 = por %p191, %p192
    %s195 = sadd.s32 %s194, 1
    %p198 = scmp.eq.s32.totalorder %s14, 1
    %p199 = scmp.ne.s32.totalorder %s194, %s196
    %p200 = scmp.eq.s32.totalorder %s14, 0
    %p201 = por %p199, %p200
    %p202 = scmp.ne.s32.totalorder %s194, %s196
    %p203 = scmp.eq.s32.totalorder %s19, 1
    %p204 = por %p202, %p203
    %p205 = scmp.ne.s32.totalorder %s196, %s197
    %p206 = scmp.eq.s32.totalorder %s19, 0
    %p207 = por %p205, %p206
    %p208 = scmp.ne.s32.totalorder %s196, %s197
    %p209 = scmp.eq.s32.totalorder %s20, 1
    %p210 = por %p208, %p209
    %p212 = scmp.ne.s32.totalorder %s197, %s211
    %p213 = scmp.eq.s32.totalorder %s20, 0
    %p214 = por %p212, %p213
    %s215 = ssub.s32 %s14, %s21
    %p216 = scmp.eq.s32.totalorder %s215, 0
    %s218 = sadd.s32 %s217, 1
    %s219 = scalar_select %p216, %s217, %s218
    %p222 = pneg %p216
    %p223 = scmp.eq.s32.totalorder %s14, 1
    %p224 = por %p222, %p223
    %p225 = scmp.ne.s32.totalorder %s217, %s220
    %p226 = scmp.eq.s32.totalorder %s14, 0
    %p227 = por %p225, %p226
    %p228 = scmp.ne.s32.totalorder %s217, %s220
    %p229 = scmp.eq.s32.totalorder %s19, 1
    %p230 = por %p228, %p229
    %p231 = scmp.ne.s32.totalorder %s220, %s221
    %p232 = scmp.eq.s32.totalorder %s19, 0
    %p233 = por %p231, %p232
    %p234 = scmp.ne.s32.totalorder %s220, %s221
    %p235 = scmp.eq.s32.totalorder %s20, 1
    %p236 = por %p234, %p235
    %p238 = scmp.ne.s32.totalorder %s221, %s237
    %p239 = scmp.eq.s32.totalorder %s20, 0
    %p240 = por %p238, %p239
    %p241 = scmp.le.s32.totalorder 1, %s14
    %p242 = scmp.lt.s32.totalorder %s14, 3
    %p243 = pnand %p241, %p242
    %p244 = pneg %p243
    // Predicated region
    $region9: #{tpu_custom_call.1} parent=5 // pred_check
      _
    $region10: #{tpu_custom_call.1} parent=5 // pred_check_branch
      %246 = sbr.rel (%p243) target = $region12
    $region11: #{tpu_custom_call.1} parent=5 // pred_region
      %s247 = ssub.s32 %s14, 1
      // Predicated region
      $region13: #{tpu_custom_call.1} parent=11 // pred_check
        %p248 = pneg %p139
      $region14: #{tpu_custom_call.1} parent=11 // pred_check_branch
        %250 = sbr.rel (%p248) target = $region16
      $region15: #{tpu_custom_call.1} parent=11 // pred_region
        _
      $region16: #{tpu_custom_call.1} parent=11 // pred_fallthru
        _
      // Predicated region
      $region17: #{tpu_custom_call.1} parent=11 // pred_check
        %p251 = pneg %p186
      $region18: #{tpu_custom_call.1} parent=11 // pred_check_branch
        %253 = sbr.rel (%p251) target = $region20
      $region19: #{tpu_custom_call.1} parent=11 // pred_region
        _
      $region20: #{tpu_custom_call.1} parent=11 // pred_fallthru
        _
      // Predicated region
      $region21: #{tpu_custom_call.1} parent=11 // pred_check
        %p254 = pneg %p207
      $region22: #{tpu_custom_call.1} parent=11 // pred_check_branch
        %256 = sbr.rel (%p254) target = $region24
      $region23: #{tpu_custom_call.1} parent=11 // pred_region
        _
      $region24: #{tpu_custom_call.1} parent=11 // pred_fallthru
        _
    $region12: #{tpu_custom_call.1} parent=5 // pred_fallthru
      _
    %p257 = scmp.lt.s32.totalorder %s14, 2
    // Predicated region
    $region25: #{tpu_custom_call.1} parent=5 // pred_check
      %p258 = pneg %p257
    $region26: #{tpu_custom_call.1} parent=5 // pred_check_branch
      %260 = sbr.rel (%p258) target = $region28
    $region27: #{tpu_custom_call.1} parent=5 // pred_region
      // Predicated region
      $region29: #{tpu_custom_call.1} parent=27 // pred_check
        %p261 = pneg %p34
      $region30: #{tpu_custom_call.1} parent=27 // pred_check_branch
        %263 = sbr.rel (%p261) target = $region32
      $region31: #{tpu_custom_call.1} parent=27 // pred_region
        %p264 = scmp.lt.s32.totalorder %s14, 1
        %s265 = scalar_select %p264, %s14, 1
        %s266 = scalar_lea.vmem %s0, %s265
      $region32: #{tpu_custom_call.1} parent=27 // pred_fallthru
        _
      // Predicated region
      $region33: #{tpu_custom_call.1} parent=27 // pred_check
        %p267 = pneg %p60
      $region34: #{tpu_custom_call.1} parent=27 // pred_check_branch
        %269 = sbr.rel (%p267) target = $region36
      $region35: #{tpu_custom_call.1} parent=27 // pred_region
        %p270 = scmp.lt.s32.totalorder %s14, 1
        %s271 = scalar_select %p270, %s14, 1
        %s272 = scalar_lea.vmem %s1, %s271
      $region36: #{tpu_custom_call.1} parent=27 // pred_fallthru
        _
      // Predicated region
      $region37: #{tpu_custom_call.1} parent=27 // pred_check
        %p273 = pneg %p86
      $region38: #{tpu_custom_call.1} parent=27 // pred_check_branch
        %275 = sbr.rel (%p273) target = $region40
      $region39: #{tpu_custom_call.1} parent=27 // pred_region
        %p276 = scmp.lt.s32.totalorder %s14, 1
        %s277 = scalar_select %p276, %s14, 1
        %s278 = smul.addr %s277, 2
        %s279 = smul.addr %s278, 8
        %s280 = scalar_lea.vmem %s2, %s279
      $region40: #{tpu_custom_call.1} parent=27 // pred_fallthru
        _
      // Predicated region
      $region41: #{tpu_custom_call.1} parent=27 // pred_check
        %p281 = pneg %p112
      $region42: #{tpu_custom_call.1} parent=27 // pred_check_branch
        %283 = sbr.rel (%p281) target = $region44
      $region43: #{tpu_custom_call.1} parent=27 // pred_region
        %p284 = scmp.lt.s32.totalorder %s14, 1
        %s285 = scalar_select %p284, %s14, 1
        %s286 = smul.addr %s285, 2
        %s287 = smul.addr %s286, 8
        %s288 = scalar_lea.vmem %s3, %s287
      $region44: #{tpu_custom_call.1} parent=27 // pred_fallthru
        _
      // Predicated region
      $region45: #{tpu_custom_call.1} parent=27 // pred_check
        %p289 = pneg %p159
      $region46: #{tpu_custom_call.1} parent=27 // pred_check_branch
        %291 = sbr.rel (%p289) target = $region48
      $region47: #{tpu_custom_call.1} parent=27 // pred_region
        %p292 = scmp.lt.s32.totalorder %s14, 1
        %s293 = scalar_select %p292, %s14, 1
        %s294 = smul.addr %s293, 4
        %s295 = scalar_lea.vmem %s5, %s294
      $region48: #{tpu_custom_call.1} parent=27 // pred_fallthru
        _
    $region28: #{tpu_custom_call.1} parent=5 // pred_fallthru
      _
    %p296 = scmp.le.s32.totalorder 1, %s14
    %p297 = scmp.lt.s32.totalorder %s14, 3
    %p298 = pnand %p296, %p297
    %p299 = pneg %p298
    // Predicated region
    $region49: #{tpu_custom_call.1} parent=5 // pred_check
      _
    $region50: #{tpu_custom_call.1} parent=5 // pred_check_branch
      %301 = sbr.rel (%p298) target = $region52
    $region51: #{tpu_custom_call.1} parent=5 // pred_region
      %s302 = ssub.s32 %s14, 1
      %p303 = scmp.lt.s32.totalorder %s19, 1
      %s304 = scalar_select %p303, %s19, 1
      %s305 = scalar_lea.vmem %s0, %s304
      %p306 = pneg %p40
      %p307 = pneg %p37
      %p308 = scmp.lt.s32.totalorder %s19, 1
      %s309 = scalar_select %p308, %s19, 1
      %s310 = scalar_lea.vmem %s1, %s309
      %p311 = pneg %p66
      %p312 = pneg %p63
      %p313 = scmp.lt.s32.totalorder %s19, 1
      %s314 = scalar_select %p313, %s19, 1
      %s315 = smul.addr %s314, 2
      %s316 = smul.addr %s315, 8
      %s317 = scalar_lea.vmem %s2, %s316
      %p318 = pneg %p92
      %p319 = pneg %p89
      %p320 = scmp.lt.s32.totalorder %s19, 1
      %s321 = scalar_select %p320, %s19, 1
      %s322 = smul.addr %s321, 2
      %s323 = smul.addr %s322, 8
      %s324 = scalar_lea.vmem %s3, %s323
      %p325 = pneg %p118
      %p326 = pneg %p115
      %p327 = pneg %p139
      %p328 = pneg %p136
      %p329 = scmp.lt.s32.totalorder %s19, 1
      %s330 = scalar_select %p329, %s19, 1
      %s331 = smul.addr %s330, 4
      %s332 = scalar_lea.vmem %s5, %s331
      %p333 = pneg %p165
      %p334 = pneg %p162
      %p335 = pneg %p186
      %p336 = pneg %p183
      %p337 = pneg %p207
      %p338 = pneg %p204
      %p339 = pneg %p233
      %p340 = pneg %p230
      %p341 = scmp.lt.s32.totalorder %s19, 1
      %s342 = scalar_select %p341, %s19, 1
      %s343 = scalar_lea.vmem %s8, %s342
      %p344 = scmp.lt.s32.totalorder %s19, 1
      %s345 = scalar_select %p344, %s19, 1
      %s346 = scalar_lea.vmem %s0, %s345
      %p347 = scmp.lt.s32.totalorder %s19, 1
      %s348 = scalar_select %p347, %s19, 1
      %s349 = scalar_lea.vmem %s1, %s348
      %p350 = scmp.lt.s32.totalorder %s19, 1
      %s351 = scalar_select %p350, %s19, 1
      %s352 = smul.addr %s351, 2
      %s353 = smul.addr %s352, 8
      %s354 = scalar_lea.vmem %s2, %s353
      %p355 = scmp.lt.s32.totalorder %s19, 1
      %s356 = scalar_select %p355, %s19, 1
      %s357 = smul.addr %s356, 2
      %s358 = smul.addr %s357, 8
      %s359 = scalar_lea.vmem %s3, %s358
      %p360 = scmp.lt.s32.totalorder %s19, 1
      %s361 = scalar_select %p360, %s19, 1
      %s362 = smul.addr %s361, 4
      %s363 = scalar_lea.vmem %s5, %s362
      %p364 = scmp.lt.s32.totalorder %s19, 1
      %s365 = scalar_select %p364, %s19, 1
      %s366 = scalar_lea.vmem %s8, %s365
      %v367 = vld [vmem:[%s359] sm:$0xff]
      %v368 = vld [vmem:[%s359 + $0x8] sm:$0xff]
      %v369 = vld [vmem:[%s346] sm:$0x1]
      %v370 = vld [vmem:[%s354] sm:$0xff]
      %v371 = vld [vmem:[%s354 + $0x8] sm:$0xff]
      %v373 = vlaneseq
      %v374 = vshrl.u32 %v373, 7
      %v375 = vsub.s32 0, %v374
      %v376 = vrot.slane %v369, %v375
      %v378 = vmul.f32 %v376, %v370
      %v379 = vmul.f32 %v376, %v371
      %v380 = vld [vmem:[%s349] sm:$0x1]
      %v382 = vlaneseq
      %v383 = vshrl.u32 %v382, 7
      %v384 = vsub.s32 0, %v383
      %v385 = vrot.slane %v380, %v384
      %v387 = vmul.f32 %v385, %v367
      %v388 = vmul.f32 %v385, %v368
      %v389 = vadd.f32 %v378, %v387
      %v390 = vadd.f32 %v379, %v388
      %vm393 = vcmask 1040384
      %v394 = vrot.slane %v389, 7
      %v395 = vrot.slane %v390, 7
      %v396 = vsel %vm393, %v394, %v395
      %v399 = vsel %vm393, 0.0, %v394
      %vm400 = vcmask 1046528
      %v401 = vrot.slane %v389, 1
      %v402 = vrot.slane %v390, 1
      %v403 = vsel %vm400, %v401, %v402
      %v405 = vsel %vm400, %v402, 0.0
      %406 = vrot.lane.b32.xlu0 %v389, 64
      %v407 = vpop.permute.xlu0 %406
      %408 = vrot.lane.b32.xlu0 %v390, 64
      %v409 = vpop.permute.xlu0 %408
      %vm412 = vcmask 523264
      %v413 = vsel %vm412, %v399, %v407
      %v414 = vsel %vm412, %v396, %v409
      %v415 = vld [vmem:[%s4] sm:$0xff]
      %v416 = vld [vmem:[%s4 + $0x8] sm:$0xff]
      %v417 = vld [vmem:[%s4 + $0x10] sm:$0xff]
      %v418 = vld [vmem:[%s4 + $0x18] sm:$0xff]
      %v419 = vld [vmem:[%s4 + $0x20] sm:$0xff]
      %v420 = vld [vmem:[%s4 + $0x28] sm:$0xff]
      %v421 = vld [vmem:[%s4 + $0x30] sm:$0xff]
      %v422 = vld [vmem:[%s4 + $0x38] sm:$0xff]
      %v423 = vld [vmem:[%s4 + $0x40] sm:$0xff]
      %v424 = vld [vmem:[%s4 + $0x48] sm:$0xff]
      %v425 = vld [vmem:[%s4 + $0x50] sm:$0xff]
      %v426 = vld [vmem:[%s4 + $0x58] sm:$0xff]
      %v427 = vld [vmem:[%s4 + $0x60] sm:$0xff]
      %v428 = vld [vmem:[%s4 + $0x68] sm:$0xff]
      %v429 = vld [vmem:[%s4 + $0x70] sm:$0xff]
      %v430 = vld [vmem:[%s4 + $0x78] sm:$0xff]
      %v431 = vld [vmem:[%s4 + $0x80] sm:$0xff]
      %v432 = vld [vmem:[%s4 + $0x88] sm:$0xff]
      %v433 = vld [vmem:[%s4 + $0x90] sm:$0xff]
      %v434 = vld [vmem:[%s4 + $0x98] sm:$0xff]
      %v435 = vld [vmem:[%s4 + $0xa0] sm:$0xff]
      %v436 = vld [vmem:[%s4 + $0xa8] sm:$0xff]
      %v437 = vld [vmem:[%s4 + $0xb0] sm:$0xff]
      %v438 = vld [vmem:[%s4 + $0xb8] sm:$0xff]
      %v439 = vld [vmem:[%s4 + $0xc0] sm:$0xff]
      %v440 = vld [vmem:[%s4 + $0xc8] sm:$0xff]
      %v441 = vld [vmem:[%s4 + $0xd0] sm:$0xff]
      %v442 = vld [vmem:[%s4 + $0xd8] sm:$0xff]
      %v443 = vld [vmem:[%s4 + $0xe0] sm:$0xff]
      %v444 = vld [vmem:[%s4 + $0xe8] sm:$0xff]
      %v445 = vld [vmem:[%s4 + $0xf0] sm:$0xff]
      %v446 = vld [vmem:[%s4 + $0xf8] sm:$0xff]
      %v447 = vld [vmem:[%s4 + $0x100] sm:$0xff]
      %v448 = vld [vmem:[%s4 + $0x108] sm:$0xff]
      %v449 = vld [vmem:[%s4 + $0x110] sm:$0xff]
      %v450 = vld [vmem:[%s4 + $0x118] sm:$0xff]
      %v451 = vld [vmem:[%s4 + $0x120] sm:$0xff]
      %v452 = vld [vmem:[%s4 + $0x128] sm:$0xff]
      %v453 = vld [vmem:[%s4 + $0x130] sm:$0xff]
      %v454 = vld [vmem:[%s4 + $0x138] sm:$0xff]
      %v455 = vld [vmem:[%s4 + $0x140] sm:$0xff]
      %v456 = vld [vmem:[%s4 + $0x148] sm:$0xff]
      %v457 = vld [vmem:[%s4 + $0x150] sm:$0xff]
      %v458 = vld [vmem:[%s4 + $0x158] sm:$0xff]
      %v459 = vld [vmem:[%s4 + $0x160] sm:$0xff]
      %v460 = vld [vmem:[%s4 + $0x168] sm:$0xff]
      %v461 = vld [vmem:[%s4 + $0x170] sm:$0xff]
      %v462 = vld [vmem:[%s4 + $0x178] sm:$0xff]
      %v463 = vld [vmem:[%s4 + $0x180] sm:$0xff]
      %v464 = vld [vmem:[%s4 + $0x188] sm:$0xff]
      %v465 = vld [vmem:[%s4 + $0x190] sm:$0xff]
      %v466 = vld [vmem:[%s4 + $0x198] sm:$0xff]
      %v467 = vld [vmem:[%s4 + $0x1a0] sm:$0xff]
      %v468 = vld [vmem:[%s4 + $0x1a8] sm:$0xff]
      %v469 = vld [vmem:[%s4 + $0x1b0] sm:$0xff]
      %v470 = vld [vmem:[%s4 + $0x1b8] sm:$0xff]
      %v471 = vld [vmem:[%s4 + $0x1c0] sm:$0xff]
      %v472 = vld [vmem:[%s4 + $0x1c8] sm:$0xff]
      %v473 = vld [vmem:[%s4 + $0x1d0] sm:$0xff]
      %v474 = vld [vmem:[%s4 + $0x1d8] sm:$0xff]
      %v475 = vld [vmem:[%s4 + $0x1e0] sm:$0xff]
      %v476 = vld [vmem:[%s4 + $0x1e8] sm:$0xff]
      %v477 = vld [vmem:[%s4 + $0x1f0] sm:$0xff]
      %v478 = vld [vmem:[%s4 + $0x1f8] sm:$0xff]
      %v479 = vld [vmem:[%s4 + $0x200] sm:$0xff]
      %v480 = vld [vmem:[%s4 + $0x208] sm:$0xff]
      %v481 = vld [vmem:[%s4 + $0x210] sm:$0xff]
      %v482 = vld [vmem:[%s4 + $0x218] sm:$0xff]
      %v483 = vld [vmem:[%s4 + $0x220] sm:$0xff]
      %v484 = vld [vmem:[%s4 + $0x228] sm:$0xff]
      %v485 = vld [vmem:[%s4 + $0x230] sm:$0xff]
      %v486 = vld [vmem:[%s4 + $0x238] sm:$0xff]
      %v487 = vld [vmem:[%s4 + $0x240] sm:$0xff]
      %v488 = vld [vmem:[%s4 + $0x248] sm:$0xff]
      %v489 = vld [vmem:[%s4 + $0x250] sm:$0xff]
      %v490 = vld [vmem:[%s4 + $0x258] sm:$0xff]
      %v491 = vld [vmem:[%s4 + $0x260] sm:$0xff]
      %v492 = vld [vmem:[%s4 + $0x268] sm:$0xff]
      %v493 = vld [vmem:[%s4 + $0x270] sm:$0xff]
      %v494 = vld [vmem:[%s4 + $0x278] sm:$0xff]
      %v495 = vld [vmem:[%s4 + $0x280] sm:$0xff]
      %v496 = vld [vmem:[%s4 + $0x288] sm:$0xff]
      %v497 = vld [vmem:[%s4 + $0x290] sm:$0xff]
      %v498 = vld [vmem:[%s4 + $0x298] sm:$0xff]
      %v499 = vld [vmem:[%s4 + $0x2a0] sm:$0xff]
      %v500 = vld [vmem:[%s4 + $0x2a8] sm:$0xff]
      %v501 = vld [vmem:[%s4 + $0x2b0] sm:$0xff]
      %v502 = vld [vmem:[%s4 + $0x2b8] sm:$0xff]
      %v503 = vld [vmem:[%s4 + $0x2c0] sm:$0xff]
      %v504 = vld [vmem:[%s4 + $0x2c8] sm:$0xff]
      %v505 = vld [vmem:[%s4 + $0x2d0] sm:$0xff]
      %v506 = vld [vmem:[%s4 + $0x2d8] sm:$0xff]
      %v507 = vld [vmem:[%s4 + $0x2e0] sm:$0xff]
      %v508 = vld [vmem:[%s4 + $0x2e8] sm:$0xff]
      %v509 = vld [vmem:[%s4 + $0x2f0] sm:$0xff]
      %v510 = vld [vmem:[%s4 + $0x2f8] sm:$0xff]
      %v511 = vsel %vm412, %v403, 0
      %v514 = vsel %vm412, %v405, 0
      %516 = vmatprep.subr.mxu0 %v416
      %517 = vmatpush1.msra.mxu0 %v415
      %518 = vmatprep.subr.mxu0 %v420
      %519 = vmatpush1.msra.mxu0 %v419
      %520 = vmatprep.subr.mxu0 %v424
      %521 = vmatpush1.msra.mxu0 %v423
      %522 = vmatprep.subr.mxu0 %v428
      %523 = vmatpush1.msra.mxu0 %v427
      %524 = vmatprep.subr.mxu0 %v432
      %525 = vmatpush1.msra.mxu0 %v431
      %526 = vmatprep.subr.mxu0 %v436
      %527 = vmatpush1.msra.mxu0 %v435
      %528 = vmatprep.subr.mxu0 %v440
      %529 = vmatpush1.msra.mxu0 %v439
      %530 = vmatprep.subr.mxu0 %v444
      %531 = vmatpush1.msra.mxu0 %v443
      %532 = vmatprep.subr.mxu0 %v448
      %533 = vmatpush1.msra.mxu0 %v447
      %534 = vmatprep.subr.mxu0 %v452
      %535 = vmatpush1.msra.mxu0 %v451
      %536 = vmatprep.subr.mxu0 %v456
      %537 = vmatpush1.msra.mxu0 %v455
      %538 = vmatprep.subr.mxu0 %v460
      %539 = vmatpush1.msra.mxu0 %v459
      %540 = vmatprep.subr.mxu0 %v464
      %541 = vmatpush1.msra.mxu0 %v463
      %542 = vmatprep.subr.mxu0 %v468
      %543 = vmatpush1.msra.mxu0 %v467
      %544 = vmatprep.subr.mxu0 %v472
      %545 = vmatpush1.msra.mxu0 %v471
      %546 = vmatprep.subr.mxu0 %v476
      %547 = vmatpush1.msra.mxu0 %v475
      %548 = vmatprep.subr.mxu0 %v480
      %549 = vmatpush1.msra.mxu0 %v479
      %550 = vmatprep.subr.mxu0 %v484
      %551 = vmatpush1.msra.mxu0 %v483
      %552 = vmatprep.subr.mxu0 %v488
      %553 = vmatpush1.msra.mxu0 %v487
      %554 = vmatprep.subr.mxu0 %v492
      %555 = vmatpush1.msra.mxu0 %v491
      %556 = vmatprep.subr.mxu0 %v496
      %557 = vmatpush1.msra.mxu0 %v495
      %558 = vmatprep.subr.mxu0 %v500
      %559 = vmatpush1.msra.mxu0 %v499
      %560 = vmatprep.subr.mxu0 %v504
      %561 = vmatpush1.msra.mxu0 %v503
      %562 = vmatprep.subr.mxu0 %v508
      %563 = vmatpush1.msra.mxu0 %v507
      %564 = vmatprep.subr.mxu0 0.0
      %565 = vmatpush1.msra.mxu0 0.0
      %566 = vmatprep.subr.mxu0 0.0
      %567 = vmatpush1.msra.mxu0 0.0
      %568 = vmatprep.subr.mxu0 0.0
      %569 = vmatpush1.msra.mxu0 0.0
      %570 = vmatprep.subr.mxu0 0.0
      %571 = vmatpush1.msra.mxu0 0.0
      %572 = vmatprep.subr.mxu0 0.0
      %573 = vmatpush1.msra.mxu0 0.0
      %574 = vmatprep.subr.mxu0 0.0
      %575 = vmatpush1.msra.mxu0 0.0
      %576 = vmatprep.subr.mxu0 0.0
      %577 = vmatpush1.msra.mxu0 0.0
      %578 = vmatprep.subr.mxu0 0.0
      %579 = vmatpush1.msra.mxu0 0.0
      %580 = vmatprep.mubr.f32.mxu0 %v511
      %581 = vmatmul.mubr.f32.gmra.mrb[0].mxu0 %v413
      %v582 = vpop.f32.mrb[0].mxu0
      %v583 = vadd.f32 0.0, %v582
      %v584 = vpop.f32.mrb[0].mxu0
      %v585 = vadd.f32 0.0, %v584
      %586 = vmatprep.mubr.f32.mxu0 %v514
      %587 = vmatmul.mubr.f32.gmra.mrb[0].mxu0 %v414
      %v588 = vpop.f32.mrb[0].mxu0
      %v589 = vadd.f32 0.0, %v588
      %v590 = vpop.f32.mrb[0].mxu0
      %v591 = vadd.f32 0.0, %v590
      %592 = vdwg.mxu0
      %593 = vmatprep.subr.mxu0 %v418
      %594 = vmatpush1.msra.mxu0 %v417
      %595 = vmatprep.subr.mxu0 %v422
      %596 = vmatpush1.msra.mxu0 %v421
      %597 = vmatprep.subr.mxu0 %v426
      %598 = vmatpush1.msra.mxu0 %v425
      %599 = vmatprep.subr.mxu0 %v430
      %600 = vmatpush1.msra.mxu0 %v429
      %601 = vmatprep.subr.mxu0 %v434
      %602 = vmatpush1.msra.mxu0 %v433
      %603 = vmatprep.subr.mxu0 %v438
      %604 = vmatpush1.msra.mxu0 %v437
      %605 = vmatprep.subr.mxu0 %v442
      %606 = vmatpush1.msra.mxu0 %v441
      %607 = vmatprep.subr.mxu0 %v446
      %608 = vmatpush1.msra.mxu0 %v445
      %609 = vmatprep.subr.mxu0 %v450
      %610 = vmatpush1.msra.mxu0 %v449
      %611 = vmatprep.subr.mxu0 %v454
      %612 = vmatpush1.msra.mxu0 %v453
      %613 = vmatprep.subr.mxu0 %v458
      %614 = vmatpush1.msra.mxu0 %v457
      %615 = vmatprep.subr.mxu0 %v462
      %616 = vmatpush1.msra.mxu0 %v461
      %617 = vmatprep.subr.mxu0 %v466
      %618 = vmatpush1.msra.mxu0 %v465
      %619 = vmatprep.subr.mxu0 %v470
      %620 = vmatpush1.msra.mxu0 %v469
      %621 = vmatprep.subr.mxu0 %v474
      %622 = vmatpush1.msra.mxu0 %v473
      %623 = vmatprep.subr.mxu0 %v478
      %624 = vmatpush1.msra.mxu0 %v477
      %625 = vmatprep.subr.mxu0 %v482
      %626 = vmatpush1.msra.mxu0 %v481
      %627 = vmatprep.subr.mxu0 %v486
      %628 = vmatpush1.msra.mxu0 %v485
      %629 = vmatprep.subr.mxu0 %v490
      %630 = vmatpush1.msra.mxu0 %v489
      %631 = vmatprep.subr.mxu0 %v494
      %632 = vmatpush1.msra.mxu0 %v493
      %633 = vmatprep.subr.mxu0 %v498
      %634 = vmatpush1.msra.mxu0 %v497
      %635 = vmatprep.subr.mxu0 %v502
      %636 = vmatpush1.msra.mxu0 %v501
      %637 = vmatprep.subr.mxu0 %v506
      %638 = vmatpush1.msra.mxu0 %v505
      %639 = vmatprep.subr.mxu0 %v510
      %640 = vmatpush1.msra.mxu0 %v509
      %641 = vmatprep.subr.mxu0 0.0
      %642 = vmatpush1.msra.mxu0 0.0
      %643 = vmatprep.subr.mxu0 0.0
      %644 = vmatpush1.msra.mxu0 0.0
      %645 = vmatprep.subr.mxu0 0.0
      %646 = vmatpush1.msra.mxu0 0.0
      %647 = vmatprep.subr.mxu0 0.0
      %648 = vmatpush1.msra.mxu0 0.0
      %649 = vmatprep.subr.mxu0 0.0
      %650 = vmatpush1.msra.mxu0 0.0
      %651 = vmatprep.subr.mxu0 0.0
      %652 = vmatpush1.msra.mxu0 0.0
      %653 = vmatprep.subr.mxu0 0.0
      %654 = vmatpush1.msra.mxu0 0.0
      %655 = vmatprep.subr.mxu0 0.0
      %656 = vmatpush1.msra.mxu0 0.0
      %657 = vmatprep.mubr.f32.mxu0 %v511
      %658 = vmatmul.mubr.f32.gmra.mrb[0].mxu0 %v413
      %v659 = vpop.f32.mrb[0].mxu0
      %v660 = vadd.f32 0.0, %v659
      %v661 = vpop.f32.mrb[0].mxu0
      %v662 = vadd.f32 0.0, %v661
      %663 = vmatprep.mubr.f32.mxu0 %v514
      %664 = vmatmul.mubr.f32.gmra.mrb[0].mxu0 %v414
      %v665 = vpop.f32.mrb[0].mxu0
      %v666 = vadd.f32 0.0, %v665
      %v667 = vpop.f32.mrb[0].mxu0
      %v668 = vadd.f32 0.0, %v667
      %669 = vdwg.mxu0
      %v670 = vld [vmem:[%s363] sm:$0xf]
      %v672 = vlaneseq
      %v673 = vshrl.u32 %v672, 7
      %v674 = vsub.s32 0, %v673
      %v675 = vrot.slane %v670, %v674
      %v676 = vlaneseq
      %v677 = vshrl.u32 %v676, 7
      %v678 = vsub.s32 1, %v677
      %v679 = vrot.slane %v670, %v678
      %v680 = vlaneseq
      %v681 = vshrl.u32 %v680, 7
      %v682 = vsub.s32 2, %v681
      %v683 = vrot.slane %v670, %v682
      %v684 = vlaneseq
      %v685 = vshrl.u32 %v684, 7
      %v686 = vsub.s32 3, %v685
      %v687 = vrot.slane %v670, %v686
      %v692 = vadd.f32 %v583, %v675
      %v693 = vadd.f32 %v585, %v679
      %v694 = vadd.f32 %v660, %v683
      %v695 = vadd.f32 %v662, %v687
      %v696 = vadd.f32 %v589, %v675
      %v697 = vadd.f32 %v591, %v679
      %v698 = vadd.f32 %v666, %v683
      %v699 = vadd.f32 %v668, %v687
      %v700 = vmax.f32 %v692, 0.0
      %v701 = vmax.f32 %v693, 0.0
      %v702 = vmax.f32 %v694, 0.0
      %v703 = vmax.f32 %v695, 0.0
      %v704 = vmax.f32 %v696, 0.0
      %v705 = vmax.f32 %v697, 0.0
      %v706 = vmax.f32 %v698, 0.0
      %v707 = vmax.f32 %v699, 0.0
      %v716 = vrot.slane %v700, 7
      %v717 = vrot.slane %v701, 7
      %v718 = vrot.slane %v702, 7
      %v719 = vrot.slane %v703, 7
      %v720 = vrot.slane %v704, 7
      %v721 = vsel %vm393, %v716, %v720
      %v722 = vrot.slane %v705, 7
      %v723 = vsel %vm393, %v717, %v722
      %v724 = vrot.slane %v706, 7
      %v725 = vsel %vm393, %v718, %v724
      %v726 = vrot.slane %v707, 7
      %v727 = vsel %vm393, %v719, %v726
      %v736 = vsel %vm393, 0.0, %v716
      %v737 = vsel %vm393, 0.0, %v717
      %v738 = vsel %vm393, 0.0, %v718
      %v739 = vsel %vm393, 0.0, %v719
      %v740 = vrot.slane %v700, 1
      %v741 = vrot.slane %v704, 1
      %v742 = vsel %vm400, %v740, %v741
      %v743 = vrot.slane %v701, 1
      %v744 = vrot.slane %v705, 1
      %v745 = vsel %vm400, %v743, %v744
      %v746 = vrot.slane %v702, 1
      %v747 = vrot.slane %v706, 1
      %v748 = vsel %vm400, %v746, %v747
      %v749 = vrot.slane %v703, 1
      %v750 = vrot.slane %v707, 1
      %v751 = vsel %vm400, %v749, %v750
      %v760 = vsel %vm400, %v741, 0.0
      %v761 = vsel %vm400, %v744, 0.0
      %v762 = vsel %vm400, %v747, 0.0
      %v763 = vsel %vm400, %v750, 0.0
      %v764 = vld [vmem:[%s6] sm:$0xff]
      %v765 = vld [vmem:[%s6 + $0x8] sm:$0xff]
      %v766 = vld [vmem:[%s6 + $0x10] sm:$0xff]
      %v767 = vld [vmem:[%s6 + $0x18] sm:$0xff]
      %v768 = vld [vmem:[%s6 + $0x20] sm:$0xff]
      %v769 = vld [vmem:[%s6 + $0x28] sm:$0xff]
      %v770 = vld [vmem:[%s6 + $0x30] sm:$0xff]
      %v771 = vld [vmem:[%s6 + $0x38] sm:$0xff]
      %v772 = vld [vmem:[%s6 + $0x40] sm:$0xff]
      %v773 = vld [vmem:[%s6 + $0x48] sm:$0xff]
      %v774 = vld [vmem:[%s6 + $0x50] sm:$0xff]
      %v775 = vld [vmem:[%s6 + $0x58] sm:$0xff]
      %v776 = vld [vmem:[%s6 + $0x60] sm:$0xff]
      %v777 = vld [vmem:[%s6 + $0x68] sm:$0xff]
      %v778 = vld [vmem:[%s6 + $0x70] sm:$0xff]
      %v779 = vld [vmem:[%s6 + $0x78] sm:$0xff]
      %v780 = vld [vmem:[%s6 + $0x80] sm:$0xff]
      %v781 = vld [vmem:[%s6 + $0x88] sm:$0xff]
      %v782 = vld [vmem:[%s6 + $0x90] sm:$0xff]
      %v783 = vld [vmem:[%s6 + $0x98] sm:$0xff]
      %v784 = vld [vmem:[%s6 + $0xa0] sm:$0xff]
      %v785 = vld [vmem:[%s6 + $0xa8] sm:$0xff]
      %v786 = vld [vmem:[%s6 + $0xb0] sm:$0xff]
      %v787 = vld [vmem:[%s6 + $0xb8] sm:$0xff]
      %v788 = vld [vmem:[%s6 + $0xc0] sm:$0xff]
      %v789 = vld [vmem:[%s6 + $0xc8] sm:$0xff]
      %v790 = vld [vmem:[%s6 + $0xd0] sm:$0xff]
      %v791 = vld [vmem:[%s6 + $0xd8] sm:$0xff]
      %v792 = vld [vmem:[%s6 + $0xe0] sm:$0xff]
      %v793 = vld [vmem:[%s6 + $0xe8] sm:$0xff]
      %v794 = vld [vmem:[%s6 + $0xf0] sm:$0xff]
      %v795 = vld [vmem:[%s6 + $0xf8] sm:$0xff]
      %v796 = vld [vmem:[%s6 + $0x100] sm:$0xff]
      %v797 = vld [vmem:[%s6 + $0x108] sm:$0xff]
      %v798 = vld [vmem:[%s6 + $0x110] sm:$0xff]
      %v799 = vld [vmem:[%s6 + $0x118] sm:$0xff]
      %v800 = vld [vmem:[%s6 + $0x120] sm:$0xff]
      %v801 = vld [vmem:[%s6 + $0x128] sm:$0xff]
      %v802 = vld [vmem:[%s6 + $0x130] sm:$0xff]
      %v803 = vld [vmem:[%s6 + $0x138] sm:$0xff]
      %v804 = vld [vmem:[%s6 + $0x140] sm:$0xff]
      %v805 = vld [vmem:[%s6 + $0x148] sm:$0xff]
      %v806 = vld [vmem:[%s6 + $0x150] sm:$0xff]
      %v807 = vld [vmem:[%s6 + $0x158] sm:$0xff]
      %v808 = vld [vmem:[%s6 + $0x160] sm:$0xff]
      %v809 = vld [vmem:[%s6 + $0x168] sm:$0xff]
      %v810 = vld [vmem:[%s6 + $0x170] sm:$0xff]
      %v811 = vld [vmem:[%s6 + $0x178] sm:$0xff]
      %v812 = vld [vmem:[%s6 + $0x180] sm:$0xff]
      %v813 = vld [vmem:[%s6 + $0x188] sm:$0xff]
      %v814 = vld [vmem:[%s6 + $0x190] sm:$0xff]
      %v815 = vld [vmem:[%s6 + $0x198] sm:$0xff]
      %v816 = vld [vmem:[%s6 + $0x1a0] sm:$0xff]
      %v817 = vld [vmem:[%s6 + $0x1a8] sm:$0xff]
      %v818 = vld [vmem:[%s6 + $0x1b0] sm:$0xff]
      %v819 = vld [vmem:[%s6 + $0x1b8] sm:$0xff]
      %v820 = vld [vmem:[%s6 + $0x1c0] sm:$0xff]
      %v821 = vld [vmem:[%s6 + $0x1c8] sm:$0xff]
      %v822 = vld [vmem:[%s6 + $0x1d0] sm:$0xff]
      %v823 = vld [vmem:[%s6 + $0x1d8] sm:$0xff]
      %v824 = vld [vmem:[%s6 + $0x1e0] sm:$0xff]
      %v825 = vld [vmem:[%s6 + $0x1e8] sm:$0xff]
      %v826 = vld [vmem:[%s6 + $0x1f0] sm:$0xff]
      %v827 = vld [vmem:[%s6 + $0x1f8] sm:$0xff]
      %v828 = vld [vmem:[%s6 + $0x200] sm:$0xff]
      %v829 = vld [vmem:[%s6 + $0x208] sm:$0xff]
      %v830 = vld [vmem:[%s6 + $0x210] sm:$0xff]
      %v831 = vld [vmem:[%s6 + $0x218] sm:$0xff]
      %v832 = vld [vmem:[%s6 + $0x220] sm:$0xff]
      %v833 = vld [vmem:[%s6 + $0x228] sm:$0xff]
      %v834 = vld [vmem:[%s6 + $0x230] sm:$0xff]
      %v835 = vld [vmem:[%s6 + $0x238] sm:$0xff]
      %v836 = vld [vmem:[%s6 + $0x240] sm:$0xff]
      %v837 = vld [vmem:[%s6 + $0x248] sm:$0xff]
      %v838 = vld [vmem:[%s6 + $0x250] sm:$0xff]
      %v839 = vld [vmem:[%s6 + $0x258] sm:$0xff]
      %v840 = vld [vmem:[%s6 + $0x260] sm:$0xff]
      %v841 = vld [vmem:[%s6 + $0x268] sm:$0xff]
      %v842 = vld [vmem:[%s6 + $0x270] sm:$0xff]
      %v843 = vld [vmem:[%s6 + $0x278] sm:$0xff]
      %v844 = vld [vmem:[%s6 + $0x280] sm:$0xff]
      %v845 = vld [vmem:[%s6 + $0x288] sm:$0xff]
      %v846 = vld [vmem:[%s6 + $0x290] sm:$0xff]
      %v847 = vld [vmem:[%s6 + $0x298] sm:$0xff]
      %v848 = vld [vmem:[%s6 + $0x2a0] sm:$0xff]
      %v849 = vld [vmem:[%s6 + $0x2a8] sm:$0xff]
      %v850 = vld [vmem:[%s6 + $0x2b0] sm:$0xff]
      %v851 = vld [vmem:[%s6 + $0x2b8] sm:$0xff]
      %v852 = vld [vmem:[%s6 + $0x2c0] sm:$0xff]
      %v853 = vld [vmem:[%s6 + $0x2c8] sm:$0xff]
      %v854 = vld [vmem:[%s6 + $0x2d0] sm:$0xff]
      %v855 = vld [vmem:[%s6 + $0x2d8] sm:$0xff]
      %v856 = vld [vmem:[%s6 + $0x2e0] sm:$0xff]
      %v857 = vld [vmem:[%s6 + $0x2e8] sm:$0xff]
      %v858 = vld [vmem:[%s6 + $0x2f0] sm:$0xff]
      %v859 = vld [vmem:[%s6 + $0x2f8] sm:$0xff]
      %v860 = vld [vmem:[%s6 + $0x300] sm:$0xff]
      %v861 = vld [vmem:[%s6 + $0x308] sm:$0xff]
      %v862 = vld [vmem:[%s6 + $0x310] sm:$0xff]
      %v863 = vld [vmem:[%s6 + $0x318] sm:$0xff]
      %v864 = vld [vmem:[%s6 + $0x320] sm:$0xff]
      %v865 = vld [vmem:[%s6 + $0x328] sm:$0xff]
      %v866 = vld [vmem:[%s6 + $0x330] sm:$0xff]
      %v867 = vld [vmem:[%s6 + $0x338] sm:$0xff]
      %v868 = vld [vmem:[%s6 + $0x340] sm:$0xff]
      %v869 = vld [vmem:[%s6 + $0x348] sm:$0xff]
      %v870 = vld [vmem:[%s6 + $0x350] sm:$0xff]
      %v871 = vld [vmem:[%s6 + $0x358] sm:$0xff]
      %v872 = vld [vmem:[%s6 + $0x360] sm:$0xff]
      %v873 = vld [vmem:[%s6 + $0x368] sm:$0xff]
      %v874 = vld [vmem:[%s6 + $0x370] sm:$0xff]
      %v875 = vld [vmem:[%s6 + $0x378] sm:$0xff]
      %v876 = vld [vmem:[%s6 + $0x380] sm:$0xff]
      %v877 = vld [vmem:[%s6 + $0x388] sm:$0xff]
      %v878 = vld [vmem:[%s6 + $0x390] sm:$0xff]
      %v879 = vld [vmem:[%s6 + $0x398] sm:$0xff]
      %v880 = vld [vmem:[%s6 + $0x3a0] sm:$0xff]
      %v881 = vld [vmem:[%s6 + $0x3a8] sm:$0xff]
      %v882 = vld [vmem:[%s6 + $0x3b0] sm:$0xff]
      %v883 = vld [vmem:[%s6 + $0x3b8] sm:$0xff]
      %v884 = vld [vmem:[%s6 + $0x3c0] sm:$0xff]
      %v885 = vld [vmem:[%s6 + $0x3c8] sm:$0xff]
      %v886 = vld [vmem:[%s6 + $0x3d0] sm:$0xff]
      %v887 = vld [vmem:[%s6 + $0x3d8] sm:$0xff]
      %v888 = vld [vmem:[%s6 + $0x3e0] sm:$0xff]
      %v889 = vld [vmem:[%s6 + $0x3e8] sm:$0xff]
      %v890 = vld [vmem:[%s6 + $0x3f0] sm:$0xff]
      %v891 = vld [vmem:[%s6 + $0x3f8] sm:$0xff]
      %v892 = vld [vmem:[%s6 + $0x400] sm:$0xff]
      %v893 = vld [vmem:[%s6 + $0x408] sm:$0xff]
      %v894 = vld [vmem:[%s6 + $0x410] sm:$0xff]
      %v895 = vld [vmem:[%s6 + $0x418] sm:$0xff]
      %v896 = vld [vmem:[%s6 + $0x420] sm:$0xff]
      %v897 = vld [vmem:[%s6 + $0x428] sm:$0xff]
      %v898 = vld [vmem:[%s6 + $0x430] sm:$0xff]
      %v899 = vld [vmem:[%s6 + $0x438] sm:$0xff]
      %v900 = vld [vmem:[%s6 + $0x440] sm:$0xff]
      %v901 = vld [vmem:[%s6 + $0x448] sm:$0xff]
      %v902 = vld [vmem:[%s6 + $0x450] sm:$0xff]
      %v903 = vld [vmem:[%s6 + $0x458] sm:$0xff]
      %v904 = vld [vmem:[%s6 + $0x460] sm:$0xff]
      %v905 = vld [vmem:[%s6 + $0x468] sm:$0xff]
      %v906 = vld [vmem:[%s6 + $0x470] sm:$0xff]
      %v907 = vld [vmem:[%s6 + $0x478] sm:$0xff]
      %v908 = vld [vmem:[%s6 + $0x480] sm:$0xff]
      %v909 = vld [vmem:[%s6 + $0x488] sm:$0xff]
      %v910 = vld [vmem:[%s6 + $0x490] sm:$0xff]
      %v911 = vld [vmem:[%s6 + $0x498] sm:$0xff]
      %v912 = vld [vmem:[%s6 + $0x4a0] sm:$0xff]
      %v913 = vld [vmem:[%s6 + $0x4a8] sm:$0xff]
      %v914 = vld [vmem:[%s6 + $0x4b0] sm:$0xff]
      %v915 = vld [vmem:[%s6 + $0x4b8] sm:$0xff]
      %v916 = vld [vmem:[%s6 + $0x4c0] sm:$0xff]
      %v917 = vld [vmem:[%s6 + $0x4c8] sm:$0xff]
      %v918 = vld [vmem:[%s6 + $0x4d0] sm:$0xff]
      %v919 = vld [vmem:[%s6 + $0x4d8] sm:$0xff]
      %v920 = vld [vmem:[%s6 + $0x4e0] sm:$0xff]
      %v921 = vld [vmem:[%s6 + $0x4e8] sm:$0xff]
      %v922 = vld [vmem:[%s6 + $0x4f0] sm:$0xff]
      %v923 = vld [vmem:[%s6 + $0x4f8] sm:$0xff]
      %v924 = vld [vmem:[%s6 + $0x500] sm:$0xff]
      %v925 = vld [vmem:[%s6 + $0x508] sm:$0xff]
      %v926 = vld [vmem:[%s6 + $0x510] sm:$0xff]
      %v927 = vld [vmem:[%s6 + $0x518] sm:$0xff]
      %v928 = vld [vmem:[%s6 + $0x520] sm:$0xff]
      %v929 = vld [vmem:[%s6 + $0x528] sm:$0xff]
      %v930 = vld [vmem:[%s6 + $0x530] sm:$0xff]
      %v931 = vld [vmem:[%s6 + $0x538] sm:$0xff]
      %v932 = vld [vmem:[%s6 + $0x540] sm:$0xff]
      %v933 = vld [vmem:[%s6 + $0x548] sm:$0xff]
      %v934 = vld [vmem:[%s6 + $0x550] sm:$0xff]
      %v935 = vld [vmem:[%s6 + $0x558] sm:$0xff]
      %v936 = vld [vmem:[%s6 + $0x560] sm:$0xff]
      %v937 = vld [vmem:[%s6 + $0x568] sm:$0xff]
      %v938 = vld [vmem:[%s6 + $0x570] sm:$0xff]
      %v939 = vld [vmem:[%s6 + $0x578] sm:$0xff]
      %v940 = vld [vmem:[%s6 + $0x580] sm:$0xff]
      %v941 = vld [vmem:[%s6 + $0x588] sm:$0xff]
      %v942 = vld [vmem:[%s6 + $0x590] sm:$0xff]
      %v943 = vld [vmem:[%s6 + $0x598] sm:$0xff]
      %v944 = vld [vmem:[%s6 + $0x5a0] sm:$0xff]
      %v945 = vld [vmem:[%s6 + $0x5a8] sm:$0xff]
      %v946 = vld [vmem:[%s6 + $0x5b0] sm:$0xff]
      %v947 = vld [vmem:[%s6 + $0x5b8] sm:$0xff]
      %v948 = vld [vmem:[%s6 + $0x5c0] sm:$0xff]
      %v949 = vld [vmem:[%s6 + $0x5c8] sm:$0xff]
      %v950 = vld [vmem:[%s6 + $0x5d0] sm:$0xff]
      %v951 = vld [vmem:[%s6 + $0x5d8] sm:$0xff]
      %v952 = vld [vmem:[%s6 + $0x5e0] sm:$0xff]
      %v953 = vld [vmem:[%s6 + $0x5e8] sm:$0xff]
      %v954 = vld [vmem:[%s6 + $0x5f0] sm:$0xff]
      %v955 = vld [vmem:[%s6 + $0x5f8] sm:$0xff]
      %v956 = vld [vmem:[%s7] sm:$0x1]
      %v958 = vlaneseq
      %v959 = vshrl.u32 %v958, 7
      %v960 = vsub.s32 0, %v959
      %v961 = vrot.slane %v956, %v960
      %963 = vmatprep.subr.mxu0 0.0
      %964 = vmatpush1.msra.mxu0 %v764
      %965 = vmatprep.subr.mxu0 0.0
      %966 = vmatpush1.msra.mxu0 %v765
      %967 = vmatprep.subr.mxu0 0.0
      %968 = vmatpush1.msra.mxu0 %v766
      %969 = vmatprep.subr.mxu0 0.0
      %970 = vmatpush1.msra.mxu0 %v767
      %971 = vmatprep.subr.mxu0 0.0
      %972 = vmatpush1.msra.mxu0 %v768
      %973 = vmatprep.subr.mxu0 0.0
      %974 = vmatpush1.msra.mxu0 %v769
      %975 = vmatprep.subr.mxu0 0.0
      %976 = vmatpush1.msra.mxu0 %v770
      %977 = vmatprep.subr.mxu0 0.0
      %978 = vmatpush1.msra.mxu0 %v771
      %979 = vmatprep.subr.mxu0 0.0
      %980 = vmatpush1.msra.mxu0 %v772
      %981 = vmatprep.subr.mxu0 0.0
      %982 = vmatpush1.msra.mxu0 %v773
      %983 = vmatprep.subr.mxu0 0.0
      %984 = vmatpush1.msra.mxu0 %v774
      %985 = vmatprep.subr.mxu0 0.0
      %986 = vmatpush1.msra.mxu0 %v775
      %987 = vmatprep.subr.mxu0 0.0
      %988 = vmatpush1.msra.mxu0 %v776
      %989 = vmatprep.subr.mxu0 0.0
      %990 = vmatpush1.msra.mxu0 %v777
      %991 = vmatprep.subr.mxu0 0.0
      %992 = vmatpush1.msra.mxu0 %v778
      %993 = vmatprep.subr.mxu0 0.0
      %994 = vmatpush1.msra.mxu0 %v779
      %995 = vmatprep.subr.mxu0 0.0
      %996 = vmatpush1.msra.mxu0 %v780
      %997 = vmatprep.subr.mxu0 0.0
      %998 = vmatpush1.msra.mxu0 %v781
      %999 = vmatprep.subr.mxu0 0.0
      %1000 = vmatpush1.msra.mxu0 %v782
      %1001 = vmatprep.subr.mxu0 0.0
      %1002 = vmatpush1.msra.mxu0 %v783
      %1003 = vmatprep.subr.mxu0 0.0
      %1004 = vmatpush1.msra.mxu0 %v784
      %1005 = vmatprep.subr.mxu0 0.0
      %1006 = vmatpush1.msra.mxu0 %v785
      %1007 = vmatprep.subr.mxu0 0.0
      %1008 = vmatpush1.msra.mxu0 %v786
      %1009 = vmatprep.subr.mxu0 0.0
      %1010 = vmatpush1.msra.mxu0 %v787
      %1011 = vmatprep.subr.mxu0 0.0
      %1012 = vmatpush1.msra.mxu0 %v788
      %1013 = vmatprep.subr.mxu0 0.0
      %1014 = vmatpush1.msra.mxu0 %v789
      %1015 = vmatprep.subr.mxu0 0.0
      %1016 = vmatpush1.msra.mxu0 %v790
      %1017 = vmatprep.subr.mxu0 0.0
      %1018 = vmatpush1.msra.mxu0 %v791
      %1019 = vmatprep.subr.mxu0 0.0
      %1020 = vmatpush1.msra.mxu0 %v792
      %1021 = vmatprep.subr.mxu0 0.0
      %1022 = vmatpush1.msra.mxu0 %v793
      %1023 = vmatprep.subr.mxu0 0.0
      %1024 = vmatpush1.msra.mxu0 %v794
      %1025 = vmatprep.subr.mxu0 0.0
      %1026 = vmatpush1.msra.mxu0 %v795
      %1027 = vmatprep.mubr.f32.mxu0 %v737
      %1028 = vmatmul.mubr.f32.gmra.mrb[0].mxu0 %v736
      %v1029 = vpop.f32.mrb[0].mxu0
      %v1030 = vadd.f32 %v961, %v1029
      %v1031 = vpop.f32.mrb[0].mxu0
      %1032 = vmatprep.mubr.f32.mxu0 %v723
      %1033 = vmatmul.mubr.f32.gmra.mrb[0].mxu0 %v721
      %v1034 = vpop.f32.mrb[0].mxu0
      %v1035 = vadd.f32 %v961, %v1034
      %v1036 = vpop.f32.mrb[0].mxu0
      %1037 = vdwg.mxu0
      %1038 = vmatprep.subr.mxu0 0.0
      %1039 = vmatpush1.msra.mxu0 %v796
      %1040 = vmatprep.subr.mxu0 0.0
      %1041 = vmatpush1.msra.mxu0 %v797
      %1042 = vmatprep.subr.mxu0 0.0
      %1043 = vmatpush1.msra.mxu0 %v798
      %1044 = vmatprep.subr.mxu0 0.0
      %1045 = vmatpush1.msra.mxu0 %v799
      %1046 = vmatprep.subr.mxu0 0.0
      %1047 = vmatpush1.msra.mxu0 %v800
      %1048 = vmatprep.subr.mxu0 0.0
      %1049 = vmatpush1.msra.mxu0 %v801
      %1050 = vmatprep.subr.mxu0 0.0
      %1051 = vmatpush1.msra.mxu0 %v802
      %1052 = vmatprep.subr.mxu0 0.0
      %1053 = vmatpush1.msra.mxu0 %v803
      %1054 = vmatprep.subr.mxu0 0.0
      %1055 = vmatpush1.msra.mxu0 %v804
      %1056 = vmatprep.subr.mxu0 0.0
      %1057 = vmatpush1.msra.mxu0 %v805
      %1058 = vmatprep.subr.mxu0 0.0
      %1059 = vmatpush1.msra.mxu0 %v806
      %1060 = vmatprep.subr.mxu0 0.0
      %1061 = vmatpush1.msra.mxu0 %v807
      %1062 = vmatprep.subr.mxu0 0.0
      %1063 = vmatpush1.msra.mxu0 %v808
      %1064 = vmatprep.subr.mxu0 0.0
      %1065 = vmatpush1.msra.mxu0 %v809
      %1066 = vmatprep.subr.mxu0 0.0
      %1067 = vmatpush1.msra.mxu0 %v810
      %1068 = vmatprep.subr.mxu0 0.0
      %1069 = vmatpush1.msra.mxu0 %v811
      %1070 = vmatprep.subr.mxu0 0.0
      %1071 = vmatpush1.msra.mxu0 %v812
      %1072 = vmatprep.subr.mxu0 0.0
      %1073 = vmatpush1.msra.mxu0 %v813
      %1074 = vmatprep.subr.mxu0 0.0
      %1075 = vmatpush1.msra.mxu0 %v814
      %1076 = vmatprep.subr.mxu0 0.0
      %1077 = vmatpush1.msra.mxu0 %v815
      %1078 = vmatprep.subr.mxu0 0.0
      %1079 = vmatpush1.msra.mxu0 %v816
      %1080 = vmatprep.subr.mxu0 0.0
      %1081 = vmatpush1.msra.mxu0 %v817
      %1082 = vmatprep.subr.mxu0 0.0
      %1083 = vmatpush1.msra.mxu0 %v818
      %1084 = vmatprep.subr.mxu0 0.0
      %1085 = vmatpush1.msra.mxu0 %v819
      %1086 = vmatprep.subr.mxu0 0.0
      %1087 = vmatpush1.msra.mxu0 %v820
      %1088 = vmatprep.subr.mxu0 0.0
      %1089 = vmatpush1.msra.mxu0 %v821
      %1090 = vmatprep.subr.mxu0 0.0
      %1091 = vmatpush1.msra.mxu0 %v822
      %1092 = vmatprep.subr.mxu0 0.0
      %1093 = vmatpush1.msra.mxu0 %v823
      %1094 = vmatprep.subr.mxu0 0.0
      %1095 = vmatpush1.msra.mxu0 %v824
      %1096 = vmatprep.subr.mxu0 0.0
      %1097 = vmatpush1.msra.mxu0 %v825
      %1098 = vmatprep.subr.mxu0 0.0
      %1099 = vmatpush1.msra.mxu0 %v826
      %1100 = vmatprep.subr.mxu0 0.0
      %1101 = vmatpush1.msra.mxu0 %v827
      %1102 = vmatprep.mubr.f32.mxu0 %v739
      %1103 = vmatmul.mubr.f32.gmra.mrb[0].mxu0 %v738
      %v1104 = vpop.f32.mrb[0].mxu0
      %v1105 = vadd.f32 %v1030, %v1104
      %v1106 = vpop.f32.mrb[0].mxu0
      %1107 = vmatprep.mubr.f32.mxu0 %v727
      %1108 = vmatmul.mubr.f32.gmra.mrb[0].mxu0 %v725
      %v1109 = vpop.f32.mrb[0].mxu0
      %v1110 = vadd.f32 %v1035, %v1109
      %v1111 = vpop.f32.mrb[0].mxu0
      %1112 = vdwg.mxu0
      %1113 = vmatprep.subr.mxu0 0.0
      %1114 = vmatpush1.msra.mxu0 %v828
      %1115 = vmatprep.subr.mxu0 0.0
      %1116 = vmatpush1.msra.mxu0 %v829
      %1117 = vmatprep.subr.mxu0 0.0
      %1118 = vmatpush1.msra.mxu0 %v830
      %1119 = vmatprep.subr.mxu0 0.0
      %1120 = vmatpush1.msra.mxu0 %v831
      %1121 = vmatprep.subr.mxu0 0.0
      %1122 = vmatpush1.msra.mxu0 %v832
      %1123 = vmatprep.subr.mxu0 0.0
      %1124 = vmatpush1.msra.mxu0 %v833
      %1125 = vmatprep.subr.mxu0 0.0
      %1126 = vmatpush1.msra.mxu0 %v834
      %1127 = vmatprep.subr.mxu0 0.0
      %1128 = vmatpush1.msra.mxu0 %v835
      %1129 = vmatprep.subr.mxu0 0.0
      %1130 = vmatpush1.msra.mxu0 %v836
      %1131 = vmatprep.subr.mxu0 0.0
      %1132 = vmatpush1.msra.mxu0 %v837
      %1133 = vmatprep.subr.mxu0 0.0
      %1134 = vmatpush1.msra.mxu0 %v838
      %1135 = vmatprep.subr.mxu0 0.0
      %1136 = vmatpush1.msra.mxu0 %v839
      %1137 = vmatprep.subr.mxu0 0.0
      %1138 = vmatpush1.msra.mxu0 %v840
      %1139 = vmatprep.subr.mxu0 0.0
      %1140 = vmatpush1.msra.mxu0 %v841
      %1141 = vmatprep.subr.mxu0 0.0
      %1142 = vmatpush1.msra.mxu0 %v842
      %1143 = vmatprep.subr.mxu0 0.0
      %1144 = vmatpush1.msra.mxu0 %v843
      %1145 = vmatprep.subr.mxu0 0.0
      %1146 = vmatpush1.msra.mxu0 %v844
      %1147 = vmatprep.subr.mxu0 0.0
      %1148 = vmatpush1.msra.mxu0 %v845
      %1149 = vmatprep.subr.mxu0 0.0
      %1150 = vmatpush1.msra.mxu0 %v846
      %1151 = vmatprep.subr.mxu0 0.0
      %1152 = vmatpush1.msra.mxu0 %v847
      %1153 = vmatprep.subr.mxu0 0.0
      %1154 = vmatpush1.msra.mxu0 %v848
      %1155 = vmatprep.subr.mxu0 0.0
      %1156 = vmatpush1.msra.mxu0 %v849
      %1157 = vmatprep.subr.mxu0 0.0
      %1158 = vmatpush1.msra.mxu0 %v850
      %1159 = vmatprep.subr.mxu0 0.0
      %1160 = vmatpush1.msra.mxu0 %v851
      %1161 = vmatprep.subr.mxu0 0.0
      %1162 = vmatpush1.msra.mxu0 %v852
      %1163 = vmatprep.subr.mxu0 0.0
      %1164 = vmatpush1.msra.mxu0 %v853
      %1165 = vmatprep.subr.mxu0 0.0
      %1166 = vmatpush1.msra.mxu0 %v854
      %1167 = vmatprep.subr.mxu0 0.0
      %1168 = vmatpush1.msra.mxu0 %v855
      %1169 = vmatprep.subr.mxu0 0.0
      %1170 = vmatpush1.msra.mxu0 %v856
      %1171 = vmatprep.subr.mxu0 0.0
      %1172 = vmatpush1.msra.mxu0 %v857
      %1173 = vmatprep.subr.mxu0 0.0
      %1174 = vmatpush1.msra.mxu0 %v858
      %1175 = vmatprep.subr.mxu0 0.0
      %1176 = vmatpush1.msra.mxu0 %v859
      %1177 = vmatprep.mubr.f32.mxu0 %v701
      %1178 = vmatmul.mubr.f32.gmra.mrb[0].mxu0 %v700
      %v1179 = vpop.f32.mrb[0].mxu0
      %v1180 = vadd.f32 %v1105, %v1179
      %v1181 = vpop.f32.mrb[0].mxu0
      %1182 = vmatprep.mubr.f32.mxu0 %v705
      %1183 = vmatmul.mubr.f32.gmra.mrb[0].mxu0 %v704
      %v1184 = vpop.f32.mrb[0].mxu0
      %v1185 = vadd.f32 %v1110, %v1184
      %v1186 = vpop.f32.mrb[0].mxu0
      %1187 = vdwg.mxu0
      %1188 = vmatprep.subr.mxu0 0.0
      %1189 = vmatpush1.msra.mxu0 %v860
      %1190 = vmatprep.subr.mxu0 0.0
      %1191 = vmatpush1.msra.mxu0 %v861
      %1192 = vmatprep.subr.mxu0 0.0
      %1193 = vmatpush1.msra.mxu0 %v862
      %1194 = vmatprep.subr.mxu0 0.0
      %1195 = vmatpush1.msra.mxu0 %v863
      %1196 = vmatprep.subr.mxu0 0.0
      %1197 = vmatpush1.msra.mxu0 %v864
      %1198 = vmatprep.subr.mxu0 0.0
      %1199 = vmatpush1.msra.mxu0 %v865
      %1200 = vmatprep.subr.mxu0 0.0
      %1201 = vmatpush1.msra.mxu0 %v866
      %1202 = vmatprep.subr.mxu0 0.0
      %1203 = vmatpush1.msra.mxu0 %v867
      %1204 = vmatprep.subr.mxu0 0.0
      %1205 = vmatpush1.msra.mxu0 %v868
      %1206 = vmatprep.subr.mxu0 0.0
      %1207 = vmatpush1.msra.mxu0 %v869
      %1208 = vmatprep.subr.mxu0 0.0
      %1209 = vmatpush1.msra.mxu0 %v870
      %1210 = vmatprep.subr.mxu0 0.0
      %1211 = vmatpush1.msra.mxu0 %v871
      %1212 = vmatprep.subr.mxu0 0.0
      %1213 = vmatpush1.msra.mxu0 %v872
      %1214 = vmatprep.subr.mxu0 0.0
      %1215 = vmatpush1.msra.mxu0 %v873
      %1216 = vmatprep.subr.mxu0 0.0
      %1217 = vmatpush1.msra.mxu0 %v874
      %1218 = vmatprep.subr.mxu0 0.0
      %1219 = vmatpush1.msra.mxu0 %v875
      %1220 = vmatprep.subr.mxu0 0.0
      %1221 = vmatpush1.msra.mxu0 %v876
      %1222 = vmatprep.subr.mxu0 0.0
      %1223 = vmatpush1.msra.mxu0 %v877
      %1224 = vmatprep.subr.mxu0 0.0
      %1225 = vmatpush1.msra.mxu0 %v878
      %1226 = vmatprep.subr.mxu0 0.0
      %1227 = vmatpush1.msra.mxu0 %v879
      %1228 = vmatprep.subr.mxu0 0.0
      %1229 = vmatpush1.msra.mxu0 %v880
      %1230 = vmatprep.subr.mxu0 0.0
      %1231 = vmatpush1.msra.mxu0 %v881
      %1232 = vmatprep.subr.mxu0 0.0
      %1233 = vmatpush1.msra.mxu0 %v882
      %1234 = vmatprep.subr.mxu0 0.0
      %1235 = vmatpush1.msra.mxu0 %v883
      %1236 = vmatprep.subr.mxu0 0.0
      %1237 = vmatpush1.msra.mxu0 %v884
      %1238 = vmatprep.subr.mxu0 0.0
      %1239 = vmatpush1.msra.mxu0 %v885
      %1240 = vmatprep.subr.mxu0 0.0
      %1241 = vmatpush1.msra.mxu0 %v886
      %1242 = vmatprep.subr.mxu0 0.0
      %1243 = vmatpush1.msra.mxu0 %v887
      %1244 = vmatprep.subr.mxu0 0.0
      %1245 = vmatpush1.msra.mxu0 %v888
      %1246 = vmatprep.subr.mxu0 0.0
      %1247 = vmatpush1.msra.mxu0 %v889
      %1248 = vmatprep.subr.mxu0 0.0
      %1249 = vmatpush1.msra.mxu0 %v890
      %1250 = vmatprep.subr.mxu0 0.0
      %1251 = vmatpush1.msra.mxu0 %v891
      %1252 = vmatprep.mubr.f32.mxu0 %v703
      %1253 = vmatmul.mubr.f32.gmra.mrb[0].mxu0 %v702
      %v1254 = vpop.f32.mrb[0].mxu0
      %v1255 = vadd.f32 %v1180, %v1254
      %v1256 = vpop.f32.mrb[0].mxu0
      %1257 = vmatprep.mubr.f32.mxu0 %v707
      %1258 = vmatmul.mubr.f32.gmra.mrb[0].mxu0 %v706
      %v1259 = vpop.f32.mrb[0].mxu0
      %v1260 = vadd.f32 %v1185, %v1259
      %v1261 = vpop.f32.mrb[0].mxu0
      %1262 = vdwg.mxu0
      %1263 = vmatprep.subr.mxu0 0.0
      %1264 = vmatpush1.msra.mxu0 %v892
      %1265 = vmatprep.subr.mxu0 0.0
      %1266 = vmatpush1.msra.mxu0 %v893
      %1267 = vmatprep.subr.mxu0 0.0
      %1268 = vmatpush1.msra.mxu0 %v894
      %1269 = vmatprep.subr.mxu0 0.0
      %1270 = vmatpush1.msra.mxu0 %v895
      %1271 = vmatprep.subr.mxu0 0.0
      %1272 = vmatpush1.msra.mxu0 %v896
      %1273 = vmatprep.subr.mxu0 0.0
      %1274 = vmatpush1.msra.mxu0 %v897
      %1275 = vmatprep.subr.mxu0 0.0
      %1276 = vmatpush1.msra.mxu0 %v898
      %1277 = vmatprep.subr.mxu0 0.0
      %1278 = vmatpush1.msra.mxu0 %v899
      %1279 = vmatprep.subr.mxu0 0.0
      %1280 = vmatpush1.msra.mxu0 %v900
      %1281 = vmatprep.subr.mxu0 0.0
      %1282 = vmatpush1.msra.mxu0 %v901
      %1283 = vmatprep.subr.mxu0 0.0
      %1284 = vmatpush1.msra.mxu0 %v902
      %1285 = vmatprep.subr.mxu0 0.0
      %1286 = vmatpush1.msra.mxu0 %v903
      %1287 = vmatprep.subr.mxu0 0.0
      %1288 = vmatpush1.msra.mxu0 %v904
      %1289 = vmatprep.subr.mxu0 0.0
      %1290 = vmatpush1.msra.mxu0 %v905
      %1291 = vmatprep.subr.mxu0 0.0
      %1292 = vmatpush1.msra.mxu0 %v906
      %1293 = vmatprep.subr.mxu0 0.0
      %1294 = vmatpush1.msra.mxu0 %v907
      %1295 = vmatprep.subr.mxu0 0.0
      %1296 = vmatpush1.msra.mxu0 %v908
      %1297 = vmatprep.subr.mxu0 0.0
      %1298 = vmatpush1.msra.mxu0 %v909
      %1299 = vmatprep.subr.mxu0 0.0
      %1300 = vmatpush1.msra.mxu0 %v910
      %1301 = vmatprep.subr.mxu0 0.0
      %1302 = vmatpush1.msra.mxu0 %v911
      %1303 = vmatprep.subr.mxu0 0.0
      %1304 = vmatpush1.msra.mxu0 %v912
      %1305 = vmatprep.subr.mxu0 0.0
      %1306 = vmatpush1.msra.mxu0 %v913
      %1307 = vmatprep.subr.mxu0 0.0
      %1308 = vmatpush1.msra.mxu0 %v914
      %1309 = vmatprep.subr.mxu0 0.0
      %1310 = vmatpush1.msra.mxu0 %v915
      %1311 = vmatprep.subr.mxu0 0.0
      %1312 = vmatpush1.msra.mxu0 %v916
      %1313 = vmatprep.subr.mxu0 0.0
      %1314 = vmatpush1.msra.mxu0 %v917
      %1315 = vmatprep.subr.mxu0 0.0
      %1316 = vmatpush1.msra.mxu0 %v918
      %1317 = vmatprep.subr.mxu0 0.0
      %1318 = vmatpush1.msra.mxu0 %v919
      %1319 = vmatprep.subr.mxu0 0.0
      %1320 = vmatpush1.msra.mxu0 %v920
      %1321 = vmatprep.subr.mxu0 0.0
      %1322 = vmatpush1.msra.mxu0 %v921
      %1323 = vmatprep.subr.mxu0 0.0
      %1324 = vmatpush1.msra.mxu0 %v922
      %1325 = vmatprep.subr.mxu0 0.0
      %1326 = vmatpush1.msra.mxu0 %v923
      %1327 = vmatprep.mubr.f32.mxu0 %v745
      %1328 = vmatmul.mubr.f32.gmra.mrb[0].mxu0 %v742
      %v1329 = vpop.f32.mrb[0].mxu0
      %v1330 = vadd.f32 %v1255, %v1329
      %v1331 = vpop.f32.mrb[0].mxu0
      %1332 = vmatprep.mubr.f32.mxu0 %v761
      %1333 = vmatmul.mubr.f32.gmra.mrb[0].mxu0 %v760
      %v1334 = vpop.f32.mrb[0].mxu0
      %v1335 = vadd.f32 %v1260, %v1334
      %v1336 = vpop.f32.mrb[0].mxu0
      %1337 = vdwg.mxu0
      %1338 = vmatprep.subr.mxu0 0.0
      %1339 = vmatpush1.msra.mxu0 %v924
      %1340 = vmatprep.subr.mxu0 0.0
      %1341 = vmatpush1.msra.mxu0 %v925
      %1342 = vmatprep.subr.mxu0 0.0
      %1343 = vmatpush1.msra.mxu0 %v926
      %1344 = vmatprep.subr.mxu0 0.0
      %1345 = vmatpush1.msra.mxu0 %v927
      %1346 = vmatprep.subr.mxu0 0.0
      %1347 = vmatpush1.msra.mxu0 %v928
      %1348 = vmatprep.subr.mxu0 0.0
      %1349 = vmatpush1.msra.mxu0 %v929
      %1350 = vmatprep.subr.mxu0 0.0
      %1351 = vmatpush1.msra.mxu0 %v930
      %1352 = vmatprep.subr.mxu0 0.0
      %1353 = vmatpush1.msra.mxu0 %v931
      %1354 = vmatprep.subr.mxu0 0.0
      %1355 = vmatpush1.msra.mxu0 %v932
      %1356 = vmatprep.subr.mxu0 0.0
      %1357 = vmatpush1.msra.mxu0 %v933
      %1358 = vmatprep.subr.mxu0 0.0
      %1359 = vmatpush1.msra.mxu0 %v934
      %1360 = vmatprep.subr.mxu0 0.0
      %1361 = vmatpush1.msra.mxu0 %v935
      %1362 = vmatprep.subr.mxu0 0.0
      %1363 = vmatpush1.msra.mxu0 %v936
      %1364 = vmatprep.subr.mxu0 0.0
      %1365 = vmatpush1.msra.mxu0 %v937
      %1366 = vmatprep.subr.mxu0 0.0
      %1367 = vmatpush1.msra.mxu0 %v938
      %1368 = vmatprep.subr.mxu0 0.0
      %1369 = vmatpush1.msra.mxu0 %v939
      %1370 = vmatprep.subr.mxu0 0.0
      %1371 = vmatpush1.msra.mxu0 %v940
      %1372 = vmatprep.subr.mxu0 0.0
      %1373 = vmatpush1.msra.mxu0 %v941
      %1374 = vmatprep.subr.mxu0 0.0
      %1375 = vmatpush1.msra.mxu0 %v942
      %1376 = vmatprep.subr.mxu0 0.0
      %1377 = vmatpush1.msra.mxu0 %v943
      %1378 = vmatprep.subr.mxu0 0.0
      %1379 = vmatpush1.msra.mxu0 %v944
      %1380 = vmatprep.subr.mxu0 0.0
      %1381 = vmatpush1.msra.mxu0 %v945
      %1382 = vmatprep.subr.mxu0 0.0
      %1383 = vmatpush1.msra.mxu0 %v946
      %1384 = vmatprep.subr.mxu0 0.0
      %1385 = vmatpush1.msra.mxu0 %v947
      %1386 = vmatprep.subr.mxu0 0.0
      %1387 = vmatpush1.msra.mxu0 %v948
      %1388 = vmatprep.subr.mxu0 0.0
      %1389 = vmatpush1.msra.mxu0 %v949
      %1390 = vmatprep.subr.mxu0 0.0
      %1391 = vmatpush1.msra.mxu0 %v950
      %1392 = vmatprep.subr.mxu0 0.0
      %1393 = vmatpush1.msra.mxu0 %v951
      %1394 = vmatprep.subr.mxu0 0.0
      %1395 = vmatpush1.msra.mxu0 %v952
      %1396 = vmatprep.subr.mxu0 0.0
      %1397 = vmatpush1.msra.mxu0 %v953
      %1398 = vmatprep.subr.mxu0 0.0
      %1399 = vmatpush1.msra.mxu0 %v954
      %1400 = vmatprep.subr.mxu0 0.0
      %1401 = vmatpush1.msra.mxu0 %v955
      %1402 = vmatprep.mubr.f32.mxu0 %v751
      %1403 = vmatmul.mubr.f32.gmra.mrb[0].mxu0 %v748
      %v1404 = vpop.f32.mrb[0].mxu0
      %v1405 = vadd.f32 %v1330, %v1404
      %v1406 = vpop.f32.mrb[0].mxu0
      %1407 = vmatprep.mubr.f32.mxu0 %v763
      %1408 = vmatmul.mubr.f32.gmra.mrb[0].mxu0 %v762
      %v1409 = vpop.f32.mrb[0].mxu0
      %v1410 = vadd.f32 %v1335, %v1409
      %v1411 = vpop.f32.mrb[0].mxu0
      %1412 = vdwg.mxu0
      %v1413 = vsub.f32 %v1405, %v367
      %v1414 = vsub.f32 %v1410, %v368
      %v1415 = vmul.f32 %v1413, %v1413
      %v1416 = vmul.f32 %v1414, %v1414
      %v1417 = vsel %vm412, %v1415, 0.0
      %v1418 = vsel %vm412, %v1416, 0.0
      %v1419 = vadd.f32 %v1417, %v1418
      %1420 = vadd.xlane.f32.xlu0 %v1419
      %v1421 = vpop.xlane.xlu0 %1420
      %v1422 = vrot.slane %v1421, 4
      %v1423 = vadd.f32 %v1421, %v1422
      %v1424 = vrot.slane %v1423, 2
      %v1425 = vadd.f32 %v1423, %v1424
      %v1426 = vrot.slane %v1425, 1
      %v1427 = vadd.f32 %v1425, %v1426
      %s1428 = vtos %v1427
      %v1429 = vstv %s1428
      %vm1430 = vcmask 0
      %1431 = vst.msk [vmem:[%s366] sm:$0x1] %vm1430, %v1429
      %p1432 = scmp.lt.s32.totalorder %s19, 1
      %s1433 = scalar_select %p1432, %s19, 1
      %s1434 = scalar_lea.vmem %s8, %s1433
      // Predicated region
      $region53: #{tpu_custom_call.1} parent=51 // pred_check
        %p1435 = pneg %p230
      $region54: #{tpu_custom_call.1} parent=51 // pred_check_branch
        %1437 = sbr.rel (%p1435) target = $region56
      $region55: #{tpu_custom_call.1} parent=51 // pred_region
        _
      $region56: #{tpu_custom_call.1} parent=51 // pred_fallthru
        _
    $region52: #{tpu_custom_call.1} parent=5 // pred_fallthru
      _
    %p1438 = scmp.le.s32.totalorder 2, %s14
    // Predicated region
    $region57: #{tpu_custom_call.1} parent=5 // pred_check
      %p1439 = pneg %p1438
    $region58: #{tpu_custom_call.1} parent=5 // pred_check_branch
      %1441 = sbr.rel (%p1439) target = $region60
    $region59: #{tpu_custom_call.1} parent=5 // pred_region
      %s1442 = ssub.s32 %s14, 2
      // Predicated region
      $region61: #{tpu_custom_call.1} parent=59 // pred_check
        %p1443 = pneg %p236
      $region62: #{tpu_custom_call.1} parent=59 // pred_check_branch
        %1445 = sbr.rel (%p1443) target = $region64
      $region63: #{tpu_custom_call.1} parent=59 // pred_region
        %p1446 = scmp.lt.s32.totalorder %s20, 1
        %s1447 = scalar_select %p1446, %s20, 1
        %s1448 = scalar_lea.vmem %s8, %s1447
      $region64: #{tpu_custom_call.1} parent=59 // pred_fallthru
        _
    $region60: #{tpu_custom_call.1} parent=5 // pred_fallthru
      _
  $region6: #{tpu_custom_call.1} parent=0 // loop_footer
    %s18 = sadd.s32 1, %s14
  $region7: #{tpu_custom_call.1} parent=0 // loop_footer_branch
    %13 = sbr.rel target = $region3
  $region8: #{tpu_custom_call.1} parent=0 // loop_exit
    _

</llo_original>
